<compile_context>
chip_gen: v7x
topology: tpu7x:2x2x1
jax: 0.10.0
libtpu: 0.0.40
codegen_flags: <defaults>
</compile_context>

<pallas_src>
import jax
import jax.numpy as jnp
from jax import lax
from jax.experimental import pallas as pl
from jax.experimental.pallas import tpu as pltpu

HL = (128, 64, 32, 16, 8)   # hl1..hl5
OUT = 1
BN_EPS = 1e-5
LEAKY_SLOPE = 0.1
_LANE = 128                 # lane width / MXU alignment

# Packed-slab layout (bf16, shape (SLAB_ROWS, 128)):
#   rows   0..127 : w2 zero-padded to (128,128)
#   rows 128..255 : w3 zero-padded to (128,128)
#   rows 256..383 : w4 zero-padded to (128,128)
#   rows 384..511 : w5 zero-padded to (128,128)
#   rows 512..515 : b2..b5 (each one zero-padded 128-lane row)
#   row       516 : bo (lane 0)
#   row       517 : wo (lanes 0..7)
#   rows 518..527 : zero padding (row count multiple of 16 for bf16 tiling)
_ROW_BIAS = 512
_ROW_BO = 516
_ROW_WO = 517
SLAB_ROWS = 528


def _round_up(a, m):
    return ((a + m - 1) // m) * m


def _leaky_relu(z):
    return jnp.where(z >= 0, z, LEAKY_SLOPE * z)


def mlp_kernel(x_ref,      # (tile_b, tile_f)  bf16
               w1_ref,     # (tile_f, 128)     bf16 (BN folded)
               b1_ref,     # (1, 128)          f32  (BN folded)
               slab_ref,   # (SLAB_ROWS, 128)  bf16 packed layers 2..5 + output
               o_ref,      # (1, tile_b)       lane-dense output row
               acc_ref):   # (tile_b, 128)     f32 layer-1 accumulator
    k = pl.program_id(1)

    @pl.when(k == 0)
    def _init():
        acc_ref[...] = jnp.zeros_like(acc_ref)

    # layer-1 partial product for this K tile (bf16 MXU, f32 accumulation).
    acc_ref[...] += jnp.dot(x_ref[...], w1_ref[...],
                            preferred_element_type=jnp.float32)

    @pl.when(k == pl.num_programs(1) - 1)
    def _finish():
        h = _leaky_relu(acc_ref[...] + b1_ref[...])            # (tile_b, 128) f32
        h = h.astype(jnp.bfloat16)

        # layers 2..5: batch-major, weights zero-padded to (128,128) so every
        # load / matmul is full-lane and the dead columns stay exactly zero
        # (leaky_relu(0 + 0) == 0).
        for li in range(4):
            w = slab_ref[li * 128:(li + 1) * 128, :]           # (128,128) bf16
            b = slab_ref[_ROW_BIAS + li:_ROW_BIAS + li + 1, :] # (1,128)   bf16
            z = jnp.dot(h, w, preferred_element_type=jnp.float32) \
                + b.astype(jnp.float32)
            h = _leaky_relu(z).astype(jnp.bfloat16)            # (tile_b, 128)

        # output layer, lane-dense: contract the 128 lanes (lanes 8..127 of
        # both h and wo_row are zero) -> (1, tile_b), no transpose needed.
        wo_row = slab_ref[_ROW_WO:_ROW_WO + 1, :]              # (1,128) bf16
        bo = slab_ref[_ROW_BO:_ROW_BO + 1, 0:1].astype(jnp.float32)  # (1,1)
        y = lax.dot_general(wo_row, h, (((1,), (1,)), ((), ())),
                            preferred_element_type=jnp.float32)       # (1, tile_b)
        o_ref[...] = (y + bo).astype(o_ref.dtype)


def drug_response_forward(x, params, *, tile_b=512, tile_f=512):
    """Eval-mode forward. params = fold_params(...) output (w1, b1, slab)."""
    w1, b1, slab = params
    B, F = x.shape
    assert w1.shape == (F, HL[0])
    out_dtype = x.dtype

    # 128-aligned tiles; tile_b default 512 (multiple of 256 for v6e MXU).
    tile_b_eff = _round_up(min(tile_b, _round_up(B, _LANE)), _LANE)
    tile_f_eff = _round_up(min(tile_f, _round_up(F, _LANE)), _LANE)
    B_pad = _round_up(B, tile_b_eff)
    F_pad = _round_up(F, tile_f_eff)

    if (B_pad, F_pad) != (B, F):
        x = jnp.pad(x, ((0, B_pad - B), (0, F_pad - F)))
    x = x.astype(jnp.bfloat16)
    if F_pad != F:
        w1 = jnp.pad(w1, ((0, F_pad - F), (0, 0)))

    nb = B_pad // tile_b_eff
    nk = F_pad // tile_f_eff

    in_specs = [
        pl.BlockSpec((tile_b_eff, tile_f_eff), lambda i, k: (i, k)),  # x
        pl.BlockSpec((tile_f_eff, HL[0]), lambda i, k: (k, 0)),       # w1
        pl.BlockSpec((1, HL[0]), lambda i, k: (0, 0)),                # b1
        pl.BlockSpec((SLAB_ROWS, HL[0]), lambda i, k: (0, 0)),        # slab
    ]
    out_specs = pl.BlockSpec((1, tile_b_eff), lambda i, k: (0, i))

    # Footprint-derived VMEM limit (double-buffered inputs/output + scratch),
    # capped v7x-safe (64 MiB physical per core).
    x_b = tile_b_eff * tile_f_eff * 2
    w1_b = tile_f_eff * HL[0] * 2
    b1_b = 8 * HL[0] * 4
    slab_b = SLAB_ROWS * HL[0] * 2
    out_b = 8 * tile_b_eff * 4
    acc_b = tile_b_eff * HL[0] * 4
    footprint = 2 * (x_b + w1_b + b1_b + slab_b + out_b) + acc_b
    vmem_limit = int(min(48 << 20, max(16 << 20, 2 * footprint + (4 << 20))))

    flops = int(2 * B_pad * F_pad * HL[0]
                + 4 * 2 * B_pad * HL[0] * HL[0]
                + 2 * B_pad * HL[0])
    bytes_accessed = int(B_pad * F_pad * 2            # x stream (bf16)
                         + nb * F_pad * HL[0] * 2     # w1 re-streamed per b-tile
                         + nb * nk * (slab_b + HL[0] * 4)
                         + B_pad * 4)                 # output

    out = pl.pallas_call(
        mlp_kernel,
        out_shape=jax.ShapeDtypeStruct((1, B_pad), out_dtype),
        grid_spec=pltpu.PrefetchScalarGridSpec(
            num_scalar_prefetch=0,
            grid=(nb, nk),                       # reduction (feature) axis last
            in_specs=in_specs,
            out_specs=out_specs,
            scratch_shapes=[pltpu.VMEM((tile_b_eff, HL[0]), jnp.float32)],
        ),
        compiler_params=pltpu.CompilerParams(
            dimension_semantics=("parallel", "arbitrary"),
            vmem_limit_bytes=vmem_limit,
        ),
        cost_estimate=pl.CostEstimate(
            flops=flops, transcendentals=0, bytes_accessed=bytes_accessed),
    )(x, w1, b1, slab)

    return out[0, :B][:, None]                   # (B, 1)


def init_raw_params(key, input_features):
    """Raw module parameters mirroring the nn.Module (Linear + BatchNorm1d)."""
    dims = (input_features,) + HL
    layers = []
    for li in range(5):
        fan_in, fan_out = dims[li], dims[li + 1]
        key, kw, kb, km, kv = jax.random.split(key, 5)
        bound = 1.0 / float(fan_in) ** 0.5
        w = jax.random.uniform(kw, (fan_in, fan_out), jnp.float32, -bound, bound)
        b = jax.random.uniform(kb, (fan_out,), jnp.float32, -bound, bound)
        gamma = jnp.ones((fan_out,), jnp.float32)
        beta = jnp.zeros((fan_out,), jnp.float32)
        run_mean = 0.01 * jax.random.normal(km, (fan_out,), jnp.float32)
        run_var = 1.0 + 0.1 * jax.random.uniform(kv, (fan_out,), jnp.float32)
        layers.append(dict(w=w, b=b, gamma=gamma, beta=beta,
                           mean=run_mean, var=run_var))
    fan_in = HL[-1]
    key, kw, kb = jax.random.split(key, 3)
    bound = 1.0 / float(fan_in) ** 0.5
    wo = jax.random.uniform(kw, (fan_in, OUT), jnp.float32, -bound, bound)
    bo = jax.random.uniform(kb, (OUT,), jnp.float32, -bound, bound)
    return layers, (wo, bo)


def fold_params(layers, out_params):
    """One-time constant fold of eval-mode BatchNorm into the Linear layers.

    Returns:
      w1   (F, 128)        bf16  layer-1 weight (streamed / K-tiled)
      b1   (1, 128)        f32   layer-1 bias
      slab (SLAB_ROWS,128) bf16  packed layers 2..5 + output (see layout above)
    """
    def fold(L):
        scale = L["gamma"] / jnp.sqrt(L["var"] + BN_EPS)
        shift = L["beta"] - L["mean"] * scale
        return L["w"] * scale[None, :], L["b"] * scale + shift

    w1f, b1f = fold(layers[0])
    w1 = w1f.astype(jnp.bfloat16)                      # (F, 128)
    b1 = b1f[None, :].astype(jnp.float32)              # (1, 128)

    slab = jnp.zeros((SLAB_ROWS, HL[0]), jnp.float32)
    for li in range(1, 5):
        wf, bf = fold(layers[li])                      # (in, out), (out,)
        r0 = (li - 1) * HL[0]
        slab = slab.at[r0:r0 + wf.shape[0], :wf.shape[1]].set(wf)
        slab = slab.at[_ROW_BIAS + (li - 1), :bf.shape[0]].set(bf)
    wo, bo = out_params                                # (8, 1), (1,)
    slab = slab.at[_ROW_BO, 0].set(bo[0])
    slab = slab.at[_ROW_WO, :HL[4]].set(wo[:, 0])
    return w1, b1, slab.astype(jnp.bfloat16)


def reference_forward(x, layers, out_params):
    """Pure-JAX eval-mode reference using the *unfolded* BN math (f32)."""
    h = x.astype(jnp.float32)
    for L in layers:
        z = h @ L["w"] + L["b"]
        z = (z - L["mean"]) * (L["gamma"] / jnp.sqrt(L["var"] + BN_EPS)) + L["beta"]
        h = jnp.where(z >= 0, z, LEAKY_SLOPE * z)
        # Dropout(0.3): identity in eval mode.
    wo, bo = out_params
    return (h @ wo + bo).astype(x.dtype)


if __name__ == "__main__":
    key = jax.random.PRNGKey(0)
    kx, kp = jax.random.split(key)

    B, F = 16, 32                       # small batch / input_features
    x = jax.random.normal(kx, (B, F), jnp.float32)

    layers, out_p = init_raw_params(kp, F)
    params = fold_params(layers, out_p)

    out = drug_response_forward(x, params, tile_b=512, tile_f=512)
    out = jax.block_until_ready(out)

    ref = reference_forward(x, layers, out_p)
    assert out.shape == (B, OUT)
    # bf16 streaming of x / w1 / activations -> looser tolerance than pure f32.
    max_err = float(jnp.max(jnp.abs(out - ref)))
    assert jnp.allclose(out, ref, atol=3e-2, rtol=3e-2), \
        f"mismatch vs JAX reference (max abs err {max_err})"

    print("KERNEL_OK")
</pallas_src>

<mosaic_0001>
module attributes {stable_mosaic.version = 11 : i64} {
  func.func @mlp_kernel(%arg0: i32, %arg1: i32, %arg2: memref<128x128xbf16, #tpu.memory_space<vmem>>, %arg3: memref<128x128xbf16, #tpu.memory_space<vmem>>, %arg4: memref<1x128xf32, #tpu.memory_space<vmem>>, %arg5: memref<528x128xbf16, #tpu.memory_space<vmem>>, %arg6: memref<1x128xf32, #tpu.memory_space<vmem>>, %arg7: memref<128x128xf32, #tpu.memory_space<vmem>>) attributes {dimension_semantics = [#tpu.dimension_semantics<parallel>, #tpu.dimension_semantics<arbitrary>], iteration_bounds = array<i64: 1, 1>, scalar_prefetch = 0 : i64, scratch_operands = 1 : i64, tpu.core_type = #tpu.core_type<tc>, window_params = [{transform_indices = @transform_0, window_bounds = array<i64: 128, 128>}, {transform_indices = @transform_1, window_bounds = array<i64: 128, 128>}, {pipeline_mode = #tpu.pipeline_mode<synchronous>, transform_indices = @transform_2, window_bounds = array<i64: 1, 128>}, {pipeline_mode = #tpu.pipeline_mode<synchronous>, transform_indices = @transform_3, window_bounds = array<i64: 528, 128>}, {transform_indices = @transform_4, window_bounds = array<i64: 1, 128>}]} {
    %c0_i32 = arith.constant 0 : i32
    %0 = arith.cmpi eq, %arg1, %c0_i32 : i32
    %1 = arith.extui %0 : i1 to i32
    %c0_i32_0 = arith.constant 0 : i32
    %2 = arith.cmpi ne, %1, %c0_i32_0 : i32
    scf.if %2 {
      %cst_10 = arith.constant 0.000000e+00 : f32
      %12 = vector.broadcast %cst_10 : f32 to vector<128x128xf32>
      %c0_11 = arith.constant 0 : index
      %c0_12 = arith.constant 0 : index
      %13 = vector.load %arg7[%c0_11, %c0_12] : memref<128x128xf32, #tpu.memory_space<vmem>>, vector<128x128xf32>
      tpu.vector_store %arg7[%c0_11, %c0_12], %12 {strides = array<i32>} : memref<128x128xf32, #tpu.memory_space<vmem>>, vector<128x128xf32>,
    } else {
    }
    %c0 = arith.constant 0 : index
    %c0_1 = arith.constant 0 : index
    %3 = vector.load %arg7[%c0, %c0_1] : memref<128x128xf32, #tpu.memory_space<vmem>>, vector<128x128xf32>
    %c0_2 = arith.constant 0 : index
    %c0_3 = arith.constant 0 : index
    %4 = vector.load %arg2[%c0_2, %c0_3] : memref<128x128xbf16, #tpu.memory_space<vmem>>, vector<128x128xbf16>
    %c0_4 = arith.constant 0 : index
    %c0_5 = arith.constant 0 : index
    %5 = vector.load %arg3[%c0_4, %c0_5] : memref<128x128xbf16, #tpu.memory_space<vmem>>, vector<128x128xbf16>
    %cst = arith.constant dense<0.000000e+00> : vector<128x128xf32>
    %6 = tpu.matmul %4, %5, %cst {dimension_numbers = #tpu.dot_dimension_numbers<[1], [0], [0], [1], [0, 0, 1, 1], [], []>} : vector<128x128xbf16>, vector<128x128xbf16>, vector<128x128xf32> -> vector<128x128xf32>
    %7 = arith.addf %3, %6 : vector<128x128xf32>
    %c0_6 = arith.constant 0 : index
    %c0_7 = arith.constant 0 : index
    %8 = vector.load %arg7[%c0_6, %c0_7] : memref<128x128xf32, #tpu.memory_space<vmem>>, vector<128x128xf32>
    tpu.vector_store %arg7[%c0_6, %c0_7], %7 {strides = array<i32>} : memref<128x128xf32, #tpu.memory_space<vmem>>, vector<128x128xf32>,
    %c0_i32_8 = arith.constant 0 : i32
    %9 = arith.cmpi eq, %arg1, %c0_i32_8 : i32
    %10 = arith.extui %9 : i1 to i32
    %c0_i32_9 = arith.constant 0 : i32
    %11 = arith.cmpi ne, %10, %c0_i32_9 : i32
    scf.if %11 {
      %c0_10 = arith.constant 0 : index
      %c0_11 = arith.constant 0 : index
      %12 = vector.load %arg7[%c0_10, %c0_11] : memref<128x128xf32, #tpu.memory_space<vmem>>, vector<128x128xf32>
      %c0_12 = arith.constant 0 : index
      %c0_13 = arith.constant 0 : index
      %13 = vector.load %arg4[%c0_12, %c0_13] : memref<1x128xf32, #tpu.memory_space<vmem>>, vector<1x128xf32>
      %14 = vector.broadcast %13 : vector<1x128xf32> to vector<128x128xf32>
      %15 = arith.addf %12, %14 : vector<128x128xf32>
      %cst_14 = arith.constant 0.000000e+00 : f32
      %16 = vector.broadcast %cst_14 : f32 to vector<128x128xf32>
      %17 = arith.cmpf oge, %15, %16 : vector<128x128xf32>
      %cst_15 = arith.constant 1.000000e-01 : f32
      %18 = vector.broadcast %cst_15 : f32 to vector<128x128xf32>
      %19 = arith.mulf %18, %15 : vector<128x128xf32>
      %20 = arith.select %17, %15, %19 : vector<128x128xi1>, vector<128x128xf32>
      %21 = arith.truncf %20 : vector<128x128xf32> to vector<128x128xbf16>
      %c0_16 = arith.constant 0 : index
      %c0_17 = arith.constant 0 : index
      %22 = vector.load %arg5[%c0_16, %c0_17] : memref<528x128xbf16, #tpu.memory_space<vmem>>, vector<128x128xbf16>
      %c512 = arith.constant 512 : index
      %c0_18 = arith.constant 0 : index
      %23 = vector.load %arg5[%c512, %c0_18] : memref<528x128xbf16, #tpu.memory_space<vmem>>, vector<1x128xbf16>
      %cst_19 = arith.constant dense<0.000000e+00> : vector<128x128xf32>
      %24 = tpu.matmul %21, %22, %cst_19 {dimension_numbers = #tpu.dot_dimension_numbers<[1], [0], [0], [1], [0, 0, 1, 1], [], []>} : vector<128x128xbf16>, vector<128x128xbf16>, vector<128x128xf32> -> vector<128x128xf32>
      %25 = arith.extf %23 : vector<1x128xbf16> to vector<1x128xf32>
      %26 = vector.broadcast %25 : vector<1x128xf32> to vector<128x128xf32>
      %27 = arith.addf %24, %26 : vector<128x128xf32>
      %cst_20 = arith.constant 0.000000e+00 : f32
      %28 = vector.broadcast %cst_20 : f32 to vector<128x128xf32>
      %29 = arith.cmpf oge, %27, %28 : vector<128x128xf32>
      %cst_21 = arith.constant 1.000000e-01 : f32
      %30 = vector.broadcast %cst_21 : f32 to vector<128x128xf32>
      %31 = arith.mulf %30, %27 : vector<128x128xf32>
      %32 = arith.select %29, %27, %31 : vector<128x128xi1>, vector<128x128xf32>
      %33 = arith.truncf %32 : vector<128x128xf32> to vector<128x128xbf16>
      %c128 = arith.constant 128 : index
      %c0_22 = arith.constant 0 : index
      %34 = vector.load %arg5[%c128, %c0_22] : memref<528x128xbf16, #tpu.memory_space<vmem>>, vector<128x128xbf16>
      %c513 = arith.constant 513 : index
      %c0_23 = arith.constant 0 : index
      %35 = vector.load %arg5[%c513, %c0_23] : memref<528x128xbf16, #tpu.memory_space<vmem>>, vector<1x128xbf16>
      %cst_24 = arith.constant dense<0.000000e+00> : vector<128x128xf32>
      %36 = tpu.matmul %33, %34, %cst_24 {dimension_numbers = #tpu.dot_dimension_numbers<[1], [0], [0], [1], [0, 0, 1, 1], [], []>} : vector<128x128xbf16>, vector<128x128xbf16>, vector<128x128xf32> -> vector<128x128xf32>
      %37 = arith.extf %35 : vector<1x128xbf16> to vector<1x128xf32>
      %38 = vector.broadcast %37 : vector<1x128xf32> to vector<128x128xf32>
      %39 = arith.addf %36, %38 : vector<128x128xf32>
      %cst_25 = arith.constant 0.000000e+00 : f32
      %40 = vector.broadcast %cst_25 : f32 to vector<128x128xf32>
      %41 = arith.cmpf oge, %39, %40 : vector<128x128xf32>
      %cst_26 = arith.constant 1.000000e-01 : f32
      %42 = vector.broadcast %cst_26 : f32 to vector<128x128xf32>
      %43 = arith.mulf %42, %39 : vector<128x128xf32>
      %44 = arith.select %41, %39, %43 : vector<128x128xi1>, vector<128x128xf32>
      %45 = arith.truncf %44 : vector<128x128xf32> to vector<128x128xbf16>
      %c256 = arith.constant 256 : index
      %c0_27 = arith.constant 0 : index
      %46 = vector.load %arg5[%c256, %c0_27] : memref<528x128xbf16, #tpu.memory_space<vmem>>, vector<128x128xbf16>
      %c514 = arith.constant 514 : index
      %c0_28 = arith.constant 0 : index
      %47 = vector.load %arg5[%c514, %c0_28] : memref<528x128xbf16, #tpu.memory_space<vmem>>, vector<1x128xbf16>
      %cst_29 = arith.constant dense<0.000000e+00> : vector<128x128xf32>
      %48 = tpu.matmul %45, %46, %cst_29 {dimension_numbers = #tpu.dot_dimension_numbers<[1], [0], [0], [1], [0, 0, 1, 1], [], []>} : vector<128x128xbf16>, vector<128x128xbf16>, vector<128x128xf32> -> vector<128x128xf32>
      %49 = arith.extf %47 : vector<1x128xbf16> to vector<1x128xf32>
      %50 = vector.broadcast %49 : vector<1x128xf32> to vector<128x128xf32>
      %51 = arith.addf %48, %50 : vector<128x128xf32>
      %cst_30 = arith.constant 0.000000e+00 : f32
      %52 = vector.broadcast %cst_30 : f32 to vector<128x128xf32>
      %53 = arith.cmpf oge, %51, %52 : vector<128x128xf32>
      %cst_31 = arith.constant 1.000000e-01 : f32
      %54 = vector.broadcast %cst_31 : f32 to vector<128x128xf32>
      %55 = arith.mulf %54, %51 : vector<128x128xf32>
      %56 = arith.select %53, %51, %55 : vector<128x128xi1>, vector<128x128xf32>
      %57 = arith.truncf %56 : vector<128x128xf32> to vector<128x128xbf16>
      %c384 = arith.constant 384 : index
      %c0_32 = arith.constant 0 : index
      %58 = vector.load %arg5[%c384, %c0_32] : memref<528x128xbf16, #tpu.memory_space<vmem>>, vector<128x128xbf16>
      %c515 = arith.constant 515 : index
      %c0_33 = arith.constant 0 : index
      %59 = vector.load %arg5[%c515, %c0_33] : memref<528x128xbf16, #tpu.memory_space<vmem>>, vector<1x128xbf16>
      %cst_34 = arith.constant dense<0.000000e+00> : vector<128x128xf32>
      %60 = tpu.matmul %57, %58, %cst_34 {dimension_numbers = #tpu.dot_dimension_numbers<[1], [0], [0], [1], [0, 0, 1, 1], [], []>} : vector<128x128xbf16>, vector<128x128xbf16>, vector<128x128xf32> -> vector<128x128xf32>
      %61 = arith.extf %59 : vector<1x128xbf16> to vector<1x128xf32>
      %62 = vector.broadcast %61 : vector<1x128xf32> to vector<128x128xf32>
      %63 = arith.addf %60, %62 : vector<128x128xf32>
      %cst_35 = arith.constant 0.000000e+00 : f32
      %64 = vector.broadcast %cst_35 : f32 to vector<128x128xf32>
      %65 = arith.cmpf oge, %63, %64 : vector<128x128xf32>
      %cst_36 = arith.constant 1.000000e-01 : f32
      %66 = vector.broadcast %cst_36 : f32 to vector<128x128xf32>
      %67 = arith.mulf %66, %63 : vector<128x128xf32>
      %68 = arith.select %65, %63, %67 : vector<128x128xi1>, vector<128x128xf32>
      %69 = arith.truncf %68 : vector<128x128xf32> to vector<128x128xbf16>
      %c517 = arith.constant 517 : index
      %c0_37 = arith.constant 0 : index
      %70 = vector.load %arg5[%c517, %c0_37] : memref<528x128xbf16, #tpu.memory_space<vmem>>, vector<1x128xbf16>
      %c516 = arith.constant 516 : index
      %c0_38 = arith.constant 0 : index
      %71 = vector.load %arg5[%c516, %c0_38] : memref<528x128xbf16, #tpu.memory_space<vmem>>, vector<1x1xbf16>
      %72 = arith.extf %71 : vector<1x1xbf16> to vector<1x1xf32>
      %cst_39 = arith.constant dense<0.000000e+00> : vector<1x128xf32>
      %73 = tpu.matmul %70, %69, %cst_39 {dimension_numbers = #tpu.dot_dimension_numbers<[1], [1], [0], [0], [0, 0, 1, 0], [], []>} : vector<1x128xbf16>, vector<128x128xbf16>, vector<1x128xf32> -> vector<1x128xf32>
      %74 = vector.broadcast %72 : vector<1x1xf32> to vector<1x128xf32>
      %75 = arith.addf %73, %74 : vector<1x128xf32>
      %c0_40 = arith.constant 0 : index
      %c0_41 = arith.constant 0 : index
      %76 = vector.load %arg6[%c0_40, %c0_41] : memref<1x128xf32, #tpu.memory_space<vmem>>, vector<1x128xf32>
      tpu.vector_store %arg6[%c0_40, %c0_41], %75 {strides = array<i32>} : memref<1x128xf32, #tpu.memory_space<vmem>>, vector<1x128xf32>,
    } else {
    }
    return
  }
  func.func @transform_0(%arg0: i32, %arg1: i32) -> (i32, i32) {
    %c0_i32 = arith.constant 0 : i32
    return %arg0, %arg1 : i32, i32
  }
  func.func @transform_1(%arg0: i32, %arg1: i32) -> (i32, i32) {
    %c0_i32 = arith.constant 0 : i32
    %c0_i32_0 = arith.constant 0 : i32
    return %arg1, %c0_i32 : i32, i32
  }
  func.func @transform_2(%arg0: i32, %arg1: i32) -> (i32, i32) {
    %c0_i32 = arith.constant 0 : i32
    %c0_i32_0 = arith.constant 0 : i32
    %c0_i32_1 = arith.constant 0 : i32
    return %c0_i32, %c0_i32_0 : i32, i32
  }
  func.func @transform_3(%arg0: i32, %arg1: i32) -> (i32, i32) {
    %c0_i32 = arith.constant 0 : i32
    %c0_i32_0 = arith.constant 0 : i32
    %c0_i32_1 = arith.constant 0 : i32
    return %c0_i32, %c0_i32_0 : i32, i32
  }
  func.func @transform_4(%arg0: i32, %arg1: i32) -> (i32, i32) {
    %c0_i32 = arith.constant 0 : i32
    %c0_i32_0 = arith.constant 0 : i32
    return %c0_i32, %arg0 : i32, i32
  }
}

</mosaic_0001>

<llo_original>
// kernel: tpu_custom_call.1
$region0: #{tpu_custom_call.1}
  #allocation0 [shape = 'u32[]', space=smem, size = 0x4, offset = 0x4, fixed_abs, tag = 'smem constant byte address 0x4 - core index']
  #allocation1 [shape = 'u32[144,128]{1,0:T(1,128)}', space=vmem, size = 0x12000, scoped, tag = 'internal scratch']
  #allocation2 [shape = 'f32[128,128]{1,0:T(8,128)}', space=vmem, size = 0x10000, scoped, tag = 'scratch operand']
  %s0 = inlined_call_operand.hbm [shape: bf16[128,128], index: 0, kind: input, shape index: {}]
  %s1 = inlined_call_operand.hbm [shape: bf16[128,128], index: 1, kind: input, shape index: {}]
  %s2 = inlined_call_operand.vmem [shape: f32[1,128], index: 2, kind: input, shape index: {}]
  %s3 = inlined_call_operand.hbm [shape: bf16[528,128], index: 3, kind: input, shape index: {}]
  %s4 = inlined_call_operand.hbm [shape: f32[1,128], index: 4, kind: output, shape index: {}]
  %s5 = sld [smem:[#allocation0]]
  $region46: #{tpu_custom_call.1} parent=0
    _
  %s7 = ssub.s32 1, %s5
  %s8 = scalar_select 0, %s7, %s5
  $region1: #{tpu_custom_call.1} parent=0
    #allocation3 [shape = 'u8[32768]{0}', space=vmem, size = 0x8000, scoped, tag = 'input window, operand 0, single buffered']
    #allocation4 [shape = 's32[1]{0}', space=sflag, size = 0x4, scoped, tag = 'scoped memory for tpu_custom_call.1']
    #allocation5 [shape = 's32[1]{0}', space=sflag, size = 0x4, scoped, tag = 'scoped memory for tpu_custom_call.1']
    #allocation6 [shape = 'u8[32768]{0}', space=vmem, size = 0x8000, scoped, tag = 'input window, operand 1, single buffered']
    #allocation7 [shape = 's32[1]{0}', space=sflag, size = 0x4, scoped, tag = 'scoped memory for tpu_custom_call.1']
    #allocation8 [shape = 'u8[135168]{0}', space=vmem, size = 0x21000, scoped, tag = 'input window, operand 3, single buffered']
    #allocation9 [shape = 'u8[512]{0}', space=vmem, size = 0x400, scoped, tag = 'output window, operand 0, single buffered']
    %9 = vsyncpa [#allocation4], 0
    %10 = vsyncpa [#allocation7], 0
    %11 = vsyncpa [#allocation5], 0
    // Predicated region
    $region2: #{tpu_custom_call.1} parent=1 // pred_check
      _
    $region3: #{tpu_custom_call.1} parent=1 // pred_check_branch
      %13 = sbr.rel (0) target = $region5
    $region4: #{tpu_custom_call.1} parent=1 // pred_region
      %s15 = ssub.s32 1024, 1024
      %16 = vsyncadd [#allocation4], %s15
      %s17 = sshll.u32 [#allocation3], 4
      %s18 = int_to_ptr.vmem [resolvable:$true] %s17
      %23 = dma.hbm_to_vmem [thread:$0]  %s0, 1024, %s18, [#allocation4], 64, 64, 4
    $region5: #{tpu_custom_call.1} parent=1 // pred_fallthru
      _
    // Predicated region
    $region6: #{tpu_custom_call.1} parent=1 // pred_check
      _
    $region7: #{tpu_custom_call.1} parent=1 // pred_check_branch
      %25 = sbr.rel (0) target = $region9
    $region8: #{tpu_custom_call.1} parent=1 // pred_region
      %s27 = ssub.s32 1024, 1024
      %28 = vsyncadd [#allocation7], %s27
      %s29 = sshll.u32 [#allocation6], 4
      %s30 = int_to_ptr.vmem [resolvable:$true] %s29
      %35 = dma.hbm_to_vmem [thread:$0]  %s1, 1024, %s30, [#allocation7], 64, 64, 4
    $region9: #{tpu_custom_call.1} parent=1 // pred_fallthru
      _
    // Predicated region
    $region10: #{tpu_custom_call.1} parent=1 // pred_check
      _
    $region11: #{tpu_custom_call.1} parent=1 // pred_check_branch
      %37 = sbr.rel (0) target = $region13
    $region12: #{tpu_custom_call.1} parent=1 // pred_region
      _
    $region13: #{tpu_custom_call.1} parent=1 // pred_fallthru
      _
    // Predicated region
    $region14: #{tpu_custom_call.1} parent=1 // pred_check
      _
    $region15: #{tpu_custom_call.1} parent=1 // pred_check_branch
      %39 = sbr.rel (0) target = $region17
    $region16: #{tpu_custom_call.1} parent=1 // pred_region
      %s41 = ssub.s32 4224, 4224
      %42 = vsyncadd [#allocation7], %s41
      %s43 = sshll.u32 [#allocation8], 4
      %s44 = int_to_ptr.vmem [resolvable:$true] %s43
      %49 = dma.hbm_to_vmem [thread:$0]  %s3, 4224, %s44, [#allocation7], 64, 64, 4
    $region17: #{tpu_custom_call.1} parent=1 // pred_fallthru
      _
    // Predicated region
    $region18: #{tpu_custom_call.1} parent=1 // pred_check
      _
    $region19: #{tpu_custom_call.1} parent=1 // pred_check_branch
      %51 = sbr.rel (0) target = $region21
    $region20: #{tpu_custom_call.1} parent=1 // pred_region
      %52 = dma.done [#allocation4], 1024
    $region21: #{tpu_custom_call.1} parent=1 // pred_fallthru
      _
    // Predicated region
    $region22: #{tpu_custom_call.1} parent=1 // pred_check
      _
    $region23: #{tpu_custom_call.1} parent=1 // pred_check_branch
      %54 = sbr.rel (0) target = $region25
    $region24: #{tpu_custom_call.1} parent=1 // pred_region
      %55 = dma.done [#allocation7], 1024
    $region25: #{tpu_custom_call.1} parent=1 // pred_fallthru
      _
    // Predicated region
    $region26: #{tpu_custom_call.1} parent=1 // pred_check
      _
    $region27: #{tpu_custom_call.1} parent=1 // pred_check_branch
      %57 = sbr.rel (0) target = $region29
    $region28: #{tpu_custom_call.1} parent=1 // pred_region
      %58 = dma.done [#allocation7], 4224
    $region29: #{tpu_custom_call.1} parent=1 // pred_fallthru
      _
    %p60 = scmp.eq.s32.totalorder 0, 0
    // Predicated region
    $region30: #{tpu_custom_call.1} parent=1 // pred_check
      %p61 = pneg %p60
    $region31: #{tpu_custom_call.1} parent=1 // pred_check_branch
      %63 = sbr.rel (%p61) target = $region33
    $region32: #{tpu_custom_call.1} parent=1 // pred_region
      %64 = vst [vmem:[#allocation2] sm:$0xff] 0.0
      %65 = vst [vmem:[#allocation2 + $0x8] sm:$0xff] 0.0
      %66 = vst [vmem:[#allocation2 + $0x10] sm:$0xff] 0.0
      %67 = vst [vmem:[#allocation2 + $0x18] sm:$0xff] 0.0
      %68 = vst [vmem:[#allocation2 + $0x20] sm:$0xff] 0.0
      %69 = vst [vmem:[#allocation2 + $0x28] sm:$0xff] 0.0
      %70 = vst [vmem:[#allocation2 + $0x30] sm:$0xff] 0.0
      %71 = vst [vmem:[#allocation2 + $0x38] sm:$0xff] 0.0
      %72 = vst [vmem:[#allocation2 + $0x40] sm:$0xff] 0.0
      %73 = vst [vmem:[#allocation2 + $0x48] sm:$0xff] 0.0
      %74 = vst [vmem:[#allocation2 + $0x50] sm:$0xff] 0.0
      %75 = vst [vmem:[#allocation2 + $0x58] sm:$0xff] 0.0
      %76 = vst [vmem:[#allocation2 + $0x60] sm:$0xff] 0.0
      %77 = vst [vmem:[#allocation2 + $0x68] sm:$0xff] 0.0
      %78 = vst [vmem:[#allocation2 + $0x70] sm:$0xff] 0.0
      %79 = vst [vmem:[#allocation2 + $0x78] sm:$0xff] 0.0
    $region33: #{tpu_custom_call.1} parent=1 // pred_fallthru
      _
    %v80 = vld [vmem:[#allocation2] sm:$0xff]
    %v81 = vld [vmem:[#allocation2 + $0x8] sm:$0xff]
    %v82 = vld [vmem:[#allocation2 + $0x10] sm:$0xff]
    %v83 = vld [vmem:[#allocation2 + $0x18] sm:$0xff]
    %v84 = vld [vmem:[#allocation2 + $0x20] sm:$0xff]
    %v85 = vld [vmem:[#allocation2 + $0x28] sm:$0xff]
    %v86 = vld [vmem:[#allocation2 + $0x30] sm:$0xff]
    %v87 = vld [vmem:[#allocation2 + $0x38] sm:$0xff]
    %v88 = vld [vmem:[#allocation2 + $0x40] sm:$0xff]
    %v89 = vld [vmem:[#allocation2 + $0x48] sm:$0xff]
    %v90 = vld [vmem:[#allocation2 + $0x50] sm:$0xff]
    %v91 = vld [vmem:[#allocation2 + $0x58] sm:$0xff]
    %v92 = vld [vmem:[#allocation2 + $0x60] sm:$0xff]
    %v93 = vld [vmem:[#allocation2 + $0x68] sm:$0xff]
    %v94 = vld [vmem:[#allocation2 + $0x70] sm:$0xff]
    %v95 = vld [vmem:[#allocation2 + $0x78] sm:$0xff]
    %v96 = vld [vmem:[#allocation3] sm:$0xf]
    %v97 = vld [vmem:[#allocation3 + $0x4] sm:$0xf]
    %v98 = vld [vmem:[#allocation3 + $0x8] sm:$0xf]
    %v99 = vld [vmem:[#allocation3 + $0xc] sm:$0xf]
    %v100 = vld [vmem:[#allocation3 + $0x10] sm:$0xf]
    %v101 = vld [vmem:[#allocation3 + $0x14] sm:$0xf]
    %v102 = vld [vmem:[#allocation3 + $0x18] sm:$0xf]
    %v103 = vld [vmem:[#allocation3 + $0x1c] sm:$0xf]
    %v104 = vld [vmem:[#allocation3 + $0x20] sm:$0xf]
    %v105 = vld [vmem:[#allocation3 + $0x24] sm:$0xf]
    %v106 = vld [vmem:[#allocation3 + $0x28] sm:$0xf]
    %v107 = vld [vmem:[#allocation3 + $0x2c] sm:$0xf]
    %v108 = vld [vmem:[#allocation3 + $0x30] sm:$0xf]
    %v109 = vld [vmem:[#allocation3 + $0x34] sm:$0xf]
    %v110 = vld [vmem:[#allocation3 + $0x38] sm:$0xf]
    %v111 = vld [vmem:[#allocation3 + $0x3c] sm:$0xf]
    %v112 = vld [vmem:[#allocation6] sm:$0xf]
    %v113 = vld [vmem:[#allocation6 + $0x4] sm:$0xf]
    %v114 = vld [vmem:[#allocation6 + $0x8] sm:$0xf]
    %v115 = vld [vmem:[#allocation6 + $0xc] sm:$0xf]
    %v116 = vld [vmem:[#allocation6 + $0x10] sm:$0xf]
    %v117 = vld [vmem:[#allocation6 + $0x14] sm:$0xf]
    %v118 = vld [vmem:[#allocation6 + $0x18] sm:$0xf]
    %v119 = vld [vmem:[#allocation6 + $0x1c] sm:$0xf]
    %v120 = vld [vmem:[#allocation6 + $0x20] sm:$0xf]
    %v121 = vld [vmem:[#allocation6 + $0x24] sm:$0xf]
    %v122 = vld [vmem:[#allocation6 + $0x28] sm:$0xf]
    %v123 = vld [vmem:[#allocation6 + $0x2c] sm:$0xf]
    %v124 = vld [vmem:[#allocation6 + $0x30] sm:$0xf]
    %v125 = vld [vmem:[#allocation6 + $0x34] sm:$0xf]
    %v126 = vld [vmem:[#allocation6 + $0x38] sm:$0xf]
    %v127 = vld [vmem:[#allocation6 + $0x3c] sm:$0xf]
    %v144 = vunpack.c.l.b16 %v96
    %v145 = vunpack.c.l.b16 %v97
    %v146 = vunpack.c.l.b16 %v98
    %v147 = vunpack.c.l.b16 %v99
    %v148 = vunpack.c.l.b16 %v100
    %v149 = vunpack.c.l.b16 %v101
    %v150 = vunpack.c.l.b16 %v102
    %v151 = vunpack.c.l.b16 %v103
    %v152 = vunpack.c.l.b16 %v104
    %v153 = vunpack.c.l.b16 %v105
    %v154 = vunpack.c.l.b16 %v106
    %v155 = vunpack.c.l.b16 %v107
    %v156 = vunpack.c.l.b16 %v108
    %v157 = vunpack.c.l.b16 %v109
    %v158 = vunpack.c.l.b16 %v110
    %v159 = vunpack.c.l.b16 %v111
    %v160 = vpack.c.b16 %v145, %v144
    %v161 = vpack.c.b16 %v147, %v146
    %v162 = vpack.c.b16 %v149, %v148
    %v163 = vpack.c.b16 %v151, %v150
    %v164 = vpack.c.b16 %v153, %v152
    %v165 = vpack.c.b16 %v155, %v154
    %v166 = vpack.c.b16 %v157, %v156
    %v167 = vpack.c.b16 %v159, %v158
    %v192 = vunpack.c.l.b16 %v112
    %v193 = vunpack.c.l.b16 %v113
    %v194 = vunpack.c.l.b16 %v114
    %v195 = vunpack.c.l.b16 %v115
    %v196 = vunpack.c.l.b16 %v116
    %v197 = vunpack.c.l.b16 %v117
    %v198 = vunpack.c.l.b16 %v118
    %v199 = vunpack.c.l.b16 %v119
    %v200 = vunpack.c.l.b16 %v120
    %v201 = vunpack.c.l.b16 %v121
    %v202 = vunpack.c.l.b16 %v122
    %v203 = vunpack.c.l.b16 %v123
    %v204 = vunpack.c.l.b16 %v124
    %v205 = vunpack.c.l.b16 %v125
    %v206 = vunpack.c.l.b16 %v126
    %v207 = vunpack.c.l.b16 %v127
    %v208 = vpack.c.b16 %v193, %v192
    %v209 = vpack.c.b16 %v195, %v194
    %v210 = vpack.c.b16 %v197, %v196
    %v211 = vpack.c.b16 %v199, %v198
    %v212 = vpack.c.b16 %v201, %v200
    %v213 = vpack.c.b16 %v203, %v202
    %v214 = vpack.c.b16 %v205, %v204
    %v215 = vpack.c.b16 %v207, %v206
    %224 = vmatprep.subr.bf16.mxu0 0
    %225 = vmatpush1.bf16.msra.mxu0 %v208
    %226 = vmatprep.subr.bf16.mxu0 0
    %227 = vmatpush1.bf16.msra.mxu0 %v209
    %228 = vmatprep.subr.bf16.mxu0 0
    %229 = vmatpush1.bf16.msra.mxu0 %v210
    %230 = vmatprep.subr.bf16.mxu0 0
    %231 = vmatpush1.bf16.msra.mxu0 %v211
    %232 = vmatprep.subr.bf16.mxu0 0
    %233 = vmatpush1.bf16.msra.mxu0 %v212
    %234 = vmatprep.subr.bf16.mxu0 0
    %235 = vmatpush1.bf16.msra.mxu0 %v213
    %236 = vmatprep.subr.bf16.mxu0 0
    %237 = vmatpush1.bf16.msra.mxu0 %v214
    %238 = vmatprep.subr.bf16.mxu0 0
    %239 = vmatpush1.bf16.msra.mxu0 %v215
    %240 = vmatprep.subr.bf16.mxu0 0
    %241 = vmatpush1.bf16.msra.mxu0 0
    %242 = vmatprep.subr.bf16.mxu0 0
    %243 = vmatpush1.bf16.msra.mxu0 0
    %244 = vmatprep.subr.bf16.mxu0 0
    %245 = vmatpush1.bf16.msra.mxu0 0
    %246 = vmatprep.subr.bf16.mxu0 0
    %247 = vmatpush1.bf16.msra.mxu0 0
    %248 = vmatprep.subr.bf16.mxu0 0
    %249 = vmatpush1.bf16.msra.mxu0 0
    %250 = vmatprep.subr.bf16.mxu0 0
    %251 = vmatpush1.bf16.msra.mxu0 0
    %252 = vmatprep.subr.bf16.mxu0 0
    %253 = vmatpush1.bf16.msra.mxu0 0
    %254 = vmatprep.subr.bf16.mxu0 0
    %255 = vmatpush1.bf16.msra.mxu0 0
    %256 = vmatprep.mubr.bf16.mxu0 0
    %257 = vmatmul.mubr.bf16.gmra.mrb[0].mxu0 %v160
    %v258 = vpop.f32.mrb[0].mxu0
    %v259 = vadd.f32 0.0, %v258
    %v260 = vpop.f32.mrb[0].mxu0
    %v261 = vpop.f32.mrb[0].mxu0
    %v262 = vadd.f32 0.0, %v261
    %v263 = vpop.f32.mrb[0].mxu0
    %264 = vmatprep.mubr.bf16.mxu0 0
    %265 = vmatmul.mubr.bf16.gmra.mrb[0].mxu0 %v161
    %v266 = vpop.f32.mrb[0].mxu0
    %v267 = vadd.f32 0.0, %v266
    %v268 = vpop.f32.mrb[0].mxu0
    %v269 = vpop.f32.mrb[0].mxu0
    %v270 = vadd.f32 0.0, %v269
    %v271 = vpop.f32.mrb[0].mxu0
    %272 = vmatprep.mubr.bf16.mxu0 0
    %273 = vmatmul.mubr.bf16.gmra.mrb[0].mxu0 %v162
    %v274 = vpop.f32.mrb[0].mxu0
    %v275 = vadd.f32 0.0, %v274
    %v276 = vpop.f32.mrb[0].mxu0
    %v277 = vpop.f32.mrb[0].mxu0
    %v278 = vadd.f32 0.0, %v277
    %v279 = vpop.f32.mrb[0].mxu0
    %280 = vmatprep.mubr.bf16.mxu0 0
    %281 = vmatmul.mubr.bf16.gmra.mrb[0].mxu0 %v163
    %v282 = vpop.f32.mrb[0].mxu0
    %v283 = vadd.f32 0.0, %v282
    %v284 = vpop.f32.mrb[0].mxu0
    %v285 = vpop.f32.mrb[0].mxu0
    %v286 = vadd.f32 0.0, %v285
    %v287 = vpop.f32.mrb[0].mxu0
    %288 = vmatprep.mubr.bf16.mxu0 0
    %289 = vmatmul.mubr.bf16.gmra.mrb[0].mxu0 %v164
    %v290 = vpop.f32.mrb[0].mxu0
    %v291 = vadd.f32 0.0, %v290
    %v292 = vpop.f32.mrb[0].mxu0
    %v293 = vpop.f32.mrb[0].mxu0
    %v294 = vadd.f32 0.0, %v293
    %v295 = vpop.f32.mrb[0].mxu0
    %296 = vmatprep.mubr.bf16.mxu0 0
    %297 = vmatmul.mubr.bf16.gmra.mrb[0].mxu0 %v165
    %v298 = vpop.f32.mrb[0].mxu0
    %v299 = vadd.f32 0.0, %v298
    %v300 = vpop.f32.mrb[0].mxu0
    %v301 = vpop.f32.mrb[0].mxu0
    %v302 = vadd.f32 0.0, %v301
    %v303 = vpop.f32.mrb[0].mxu0
    %304 = vmatprep.mubr.bf16.mxu0 0
    %305 = vmatmul.mubr.bf16.gmra.mrb[0].mxu0 %v166
    %v306 = vpop.f32.mrb[0].mxu0
    %v307 = vadd.f32 0.0, %v306
    %v308 = vpop.f32.mrb[0].mxu0
    %v309 = vpop.f32.mrb[0].mxu0
    %v310 = vadd.f32 0.0, %v309
    %v311 = vpop.f32.mrb[0].mxu0
    %312 = vmatprep.mubr.bf16.mxu0 0
    %313 = vmatmul.mubr.bf16.gmra.mrb[0].mxu0 %v167
    %v314 = vpop.f32.mrb[0].mxu0
    %v315 = vadd.f32 0.0, %v314
    %v316 = vpop.f32.mrb[0].mxu0
    %v317 = vpop.f32.mrb[0].mxu0
    %v318 = vadd.f32 0.0, %v317
    %v319 = vpop.f32.mrb[0].mxu0
    %320 = vdwg.mxu0
    %v321 = vadd.f32 %v80, %v259
    %v322 = vadd.f32 %v81, %v262
    %v323 = vadd.f32 %v82, %v267
    %v324 = vadd.f32 %v83, %v270
    %v325 = vadd.f32 %v84, %v275
    %v326 = vadd.f32 %v85, %v278
    %v327 = vadd.f32 %v86, %v283
    %v328 = vadd.f32 %v87, %v286
    %v329 = vadd.f32 %v88, %v291
    %v330 = vadd.f32 %v89, %v294
    %v331 = vadd.f32 %v90, %v299
    %v332 = vadd.f32 %v91, %v302
    %v333 = vadd.f32 %v92, %v307
    %v334 = vadd.f32 %v93, %v310
    %v335 = vadd.f32 %v94, %v315
    %v336 = vadd.f32 %v95, %v318
    %337 = vst [vmem:[#allocation2] sm:$0xff] %v321
    %338 = vst [vmem:[#allocation2 + $0x8] sm:$0xff] %v322
    %339 = vst [vmem:[#allocation2 + $0x10] sm:$0xff] %v323
    %340 = vst [vmem:[#allocation2 + $0x18] sm:$0xff] %v324
    %341 = vst [vmem:[#allocation2 + $0x20] sm:$0xff] %v325
    %342 = vst [vmem:[#allocation2 + $0x28] sm:$0xff] %v326
    %343 = vst [vmem:[#allocation2 + $0x30] sm:$0xff] %v327
    %344 = vst [vmem:[#allocation2 + $0x38] sm:$0xff] %v328
    %345 = vst [vmem:[#allocation2 + $0x40] sm:$0xff] %v329
    %346 = vst [vmem:[#allocation2 + $0x48] sm:$0xff] %v330
    %347 = vst [vmem:[#allocation2 + $0x50] sm:$0xff] %v331
    %348 = vst [vmem:[#allocation2 + $0x58] sm:$0xff] %v332
    %349 = vst [vmem:[#allocation2 + $0x60] sm:$0xff] %v333
    %350 = vst [vmem:[#allocation2 + $0x68] sm:$0xff] %v334
    %351 = vst [vmem:[#allocation2 + $0x70] sm:$0xff] %v335
    %352 = vst [vmem:[#allocation2 + $0x78] sm:$0xff] %v336
    // Predicated region
    $region34: #{tpu_custom_call.1} parent=1 // pred_check
      %p353 = pneg %p60
    $region35: #{tpu_custom_call.1} parent=1 // pred_check_branch
      %355 = sbr.rel (%p353) target = $region37
    $region36: #{tpu_custom_call.1} parent=1 // pred_region
      %v356 = vld [vmem:[#allocation2] sm:$0xff]
      %v357 = vld [vmem:[#allocation2 + $0x8] sm:$0xff]
      %v358 = vld [vmem:[#allocation2 + $0x10] sm:$0xff]
      %v359 = vld [vmem:[#allocation2 + $0x18] sm:$0xff]
      %v360 = vld [vmem:[#allocation2 + $0x20] sm:$0xff]
      %v361 = vld [vmem:[#allocation2 + $0x28] sm:$0xff]
      %v362 = vld [vmem:[#allocation2 + $0x30] sm:$0xff]
      %v363 = vld [vmem:[#allocation2 + $0x38] sm:$0xff]
      %v364 = vld [vmem:[#allocation2 + $0x40] sm:$0xff]
      %v365 = vld [vmem:[#allocation2 + $0x48] sm:$0xff]
      %v366 = vld [vmem:[#allocation2 + $0x50] sm:$0xff]
      %v367 = vld [vmem:[#allocation2 + $0x58] sm:$0xff]
      %v368 = vld [vmem:[#allocation2 + $0x60] sm:$0xff]
      %v369 = vld [vmem:[#allocation2 + $0x68] sm:$0xff]
      %v370 = vld [vmem:[#allocation2 + $0x70] sm:$0xff]
      %v371 = vld [vmem:[#allocation2 + $0x78] sm:$0xff]
      %v372 = vld [vmem:[%s2] sm:$0x1]
      %v374 = vlaneseq
      %v375 = vshrl.u32 %v374, 7
      %v376 = vsub.s32 0, %v375
      %v377 = vrot.slane %v372, %v376
      %v379 = vadd.f32 %v356, %v377
      %v380 = vadd.f32 %v357, %v377
      %v381 = vadd.f32 %v358, %v377
      %v382 = vadd.f32 %v359, %v377
      %v383 = vadd.f32 %v360, %v377
      %v384 = vadd.f32 %v361, %v377
      %v385 = vadd.f32 %v362, %v377
      %v386 = vadd.f32 %v363, %v377
      %v387 = vadd.f32 %v364, %v377
      %v388 = vadd.f32 %v365, %v377
      %v389 = vadd.f32 %v366, %v377
      %v390 = vadd.f32 %v367, %v377
      %v391 = vadd.f32 %v368, %v377
      %v392 = vadd.f32 %v369, %v377
      %v393 = vadd.f32 %v370, %v377
      %v394 = vadd.f32 %v371, %v377
      %vm395 = vcmp.ge.f32.partialorder %v379, 0.0
      %vm396 = vcmp.ge.f32.partialorder %v380, 0.0
      %vm397 = vcmp.ge.f32.partialorder %v381, 0.0
      %vm398 = vcmp.ge.f32.partialorder %v382, 0.0
      %vm399 = vcmp.ge.f32.partialorder %v383, 0.0
      %vm400 = vcmp.ge.f32.partialorder %v384, 0.0
      %vm401 = vcmp.ge.f32.partialorder %v385, 0.0
      %vm402 = vcmp.ge.f32.partialorder %v386, 0.0
      %vm403 = vcmp.ge.f32.partialorder %v387, 0.0
      %vm404 = vcmp.ge.f32.partialorder %v388, 0.0
      %vm405 = vcmp.ge.f32.partialorder %v389, 0.0
      %vm406 = vcmp.ge.f32.partialorder %v390, 0.0
      %vm407 = vcmp.ge.f32.partialorder %v391, 0.0
      %vm408 = vcmp.ge.f32.partialorder %v392, 0.0
      %vm409 = vcmp.ge.f32.partialorder %v393, 0.0
      %vm410 = vcmp.ge.f32.partialorder %v394, 0.0
      %v411 = vmul.f32 %v379, 0.1
      %v412 = vmul.f32 %v380, 0.1
      %v413 = vmul.f32 %v381, 0.1
      %v414 = vmul.f32 %v382, 0.1
      %v415 = vmul.f32 %v383, 0.1
      %v416 = vmul.f32 %v384, 0.1
      %v417 = vmul.f32 %v385, 0.1
      %v418 = vmul.f32 %v386, 0.1
      %v419 = vmul.f32 %v387, 0.1
      %v420 = vmul.f32 %v388, 0.1
      %v421 = vmul.f32 %v389, 0.1
      %v422 = vmul.f32 %v390, 0.1
      %v423 = vmul.f32 %v391, 0.1
      %v424 = vmul.f32 %v392, 0.1
      %v425 = vmul.f32 %v393, 0.1
      %v426 = vmul.f32 %v394, 0.1
      %v427 = vsel %vm395, %v379, %v411
      %v428 = vsel %vm396, %v380, %v412
      %v429 = vsel %vm397, %v381, %v413
      %v430 = vsel %vm398, %v382, %v414
      %v431 = vsel %vm399, %v383, %v415
      %v432 = vsel %vm400, %v384, %v416
      %v433 = vsel %vm401, %v385, %v417
      %v434 = vsel %vm402, %v386, %v418
      %v435 = vsel %vm403, %v387, %v419
      %v436 = vsel %vm404, %v388, %v420
      %v437 = vsel %vm405, %v389, %v421
      %v438 = vsel %vm406, %v390, %v422
      %v439 = vsel %vm407, %v391, %v423
      %v440 = vsel %vm408, %v392, %v424
      %v441 = vsel %vm409, %v393, %v425
      %v442 = vsel %vm410, %v394, %v426
      %v443 = vpack.c.bf16 %v428, %v427
      %v444 = vpack.c.bf16 %v430, %v429
      %v445 = vpack.c.bf16 %v432, %v431
      %v446 = vpack.c.bf16 %v434, %v433
      %v447 = vpack.c.bf16 %v436, %v435
      %v448 = vpack.c.bf16 %v438, %v437
      %v449 = vpack.c.bf16 %v440, %v439
      %v450 = vpack.c.bf16 %v442, %v441
      %v451 = vld [vmem:[#allocation8] sm:$0xf]
      %v452 = vld [vmem:[#allocation8 + $0x4] sm:$0xf]
      %v453 = vld [vmem:[#allocation8 + $0x8] sm:$0xf]
      %v454 = vld [vmem:[#allocation8 + $0xc] sm:$0xf]
      %v455 = vld [vmem:[#allocation8 + $0x10] sm:$0xf]
      %v456 = vld [vmem:[#allocation8 + $0x14] sm:$0xf]
      %v457 = vld [vmem:[#allocation8 + $0x18] sm:$0xf]
      %v458 = vld [vmem:[#allocation8 + $0x1c] sm:$0xf]
      %v459 = vld [vmem:[#allocation8 + $0x20] sm:$0xf]
      %v460 = vld [vmem:[#allocation8 + $0x24] sm:$0xf]
      %v461 = vld [vmem:[#allocation8 + $0x28] sm:$0xf]
      %v462 = vld [vmem:[#allocation8 + $0x2c] sm:$0xf]
      %v463 = vld [vmem:[#allocation8 + $0x30] sm:$0xf]
      %v464 = vld [vmem:[#allocation8 + $0x34] sm:$0xf]
      %v465 = vld [vmem:[#allocation8 + $0x38] sm:$0xf]
      %v466 = vld [vmem:[#allocation8 + $0x3c] sm:$0xf]
      %v467 = vld [vmem:[#allocation8 + $0x100] sm:$0x1]
      %v468 = vunpack.c.l.bf16 %v467
      %v469 = vlaneseq
      %v470 = vshrl.u32 %v469, 7
      %v471 = vsub.s32 0, %v470
      %v472 = vrot.slane %v468, %v471
      %v489 = vunpack.c.l.b16 %v451
      %v490 = vunpack.c.l.b16 %v452
      %v491 = vunpack.c.l.b16 %v453
      %v492 = vunpack.c.l.b16 %v454
      %v493 = vunpack.c.l.b16 %v455
      %v494 = vunpack.c.l.b16 %v456
      %v495 = vunpack.c.l.b16 %v457
      %v496 = vunpack.c.l.b16 %v458
      %v497 = vunpack.c.l.b16 %v459
      %v498 = vunpack.c.l.b16 %v460
      %v499 = vunpack.c.l.b16 %v461
      %v500 = vunpack.c.l.b16 %v462
      %v501 = vunpack.c.l.b16 %v463
      %v502 = vunpack.c.l.b16 %v464
      %v503 = vunpack.c.l.b16 %v465
      %v504 = vunpack.c.l.b16 %v466
      %v505 = vpack.c.b16 %v490, %v489
      %v506 = vpack.c.b16 %v492, %v491
      %v507 = vpack.c.b16 %v494, %v493
      %v508 = vpack.c.b16 %v496, %v495
      %v509 = vpack.c.b16 %v498, %v497
      %v510 = vpack.c.b16 %v500, %v499
      %v511 = vpack.c.b16 %v502, %v501
      %v512 = vpack.c.b16 %v504, %v503
      %521 = vmatprep.subr.bf16.mxu0 0
      %522 = vmatpush1.bf16.msra.mxu0 %v505
      %523 = vmatprep.subr.bf16.mxu0 0
      %524 = vmatpush1.bf16.msra.mxu0 %v506
      %525 = vmatprep.subr.bf16.mxu0 0
      %526 = vmatpush1.bf16.msra.mxu0 %v507
      %527 = vmatprep.subr.bf16.mxu0 0
      %528 = vmatpush1.bf16.msra.mxu0 %v508
      %529 = vmatprep.subr.bf16.mxu0 0
      %530 = vmatpush1.bf16.msra.mxu0 %v509
      %531 = vmatprep.subr.bf16.mxu0 0
      %532 = vmatpush1.bf16.msra.mxu0 %v510
      %533 = vmatprep.subr.bf16.mxu0 0
      %534 = vmatpush1.bf16.msra.mxu0 %v511
      %535 = vmatprep.subr.bf16.mxu0 0
      %536 = vmatpush1.bf16.msra.mxu0 %v512
      %537 = vmatprep.subr.bf16.mxu0 0
      %538 = vmatpush1.bf16.msra.mxu0 0
      %539 = vmatprep.subr.bf16.mxu0 0
      %540 = vmatpush1.bf16.msra.mxu0 0
      %541 = vmatprep.subr.bf16.mxu0 0
      %542 = vmatpush1.bf16.msra.mxu0 0
      %543 = vmatprep.subr.bf16.mxu0 0
      %544 = vmatpush1.bf16.msra.mxu0 0
      %545 = vmatprep.subr.bf16.mxu0 0
      %546 = vmatpush1.bf16.msra.mxu0 0
      %547 = vmatprep.subr.bf16.mxu0 0
      %548 = vmatpush1.bf16.msra.mxu0 0
      %549 = vmatprep.subr.bf16.mxu0 0
      %550 = vmatpush1.bf16.msra.mxu0 0
      %551 = vmatprep.subr.bf16.mxu0 0
      %552 = vmatpush1.bf16.msra.mxu0 0
      %553 = vmatprep.mubr.bf16.mxu0 0
      %554 = vmatmul.mubr.bf16.gmra.mrb[0].mxu0 %v443
      %v555 = vpop.f32.mrb[0].mxu0
      %v556 = vadd.f32 %v472, %v555
      %v557 = vpop.f32.mrb[0].mxu0
      %v558 = vpop.f32.mrb[0].mxu0
      %v559 = vadd.f32 %v472, %v558
      %v560 = vpop.f32.mrb[0].mxu0
      %561 = vmatprep.mubr.bf16.mxu0 0
      %562 = vmatmul.mubr.bf16.gmra.mrb[0].mxu0 %v444
      %v563 = vpop.f32.mrb[0].mxu0
      %v564 = vadd.f32 %v472, %v563
      %v565 = vpop.f32.mrb[0].mxu0
      %v566 = vpop.f32.mrb[0].mxu0
      %v567 = vadd.f32 %v472, %v566
      %v568 = vpop.f32.mrb[0].mxu0
      %569 = vmatprep.mubr.bf16.mxu0 0
      %570 = vmatmul.mubr.bf16.gmra.mrb[0].mxu0 %v445
      %v571 = vpop.f32.mrb[0].mxu0
      %v572 = vadd.f32 %v472, %v571
      %v573 = vpop.f32.mrb[0].mxu0
      %v574 = vpop.f32.mrb[0].mxu0
      %v575 = vadd.f32 %v472, %v574
      %v576 = vpop.f32.mrb[0].mxu0
      %577 = vmatprep.mubr.bf16.mxu0 0
      %578 = vmatmul.mubr.bf16.gmra.mrb[0].mxu0 %v446
      %v579 = vpop.f32.mrb[0].mxu0
      %v580 = vadd.f32 %v472, %v579
      %v581 = vpop.f32.mrb[0].mxu0
      %v582 = vpop.f32.mrb[0].mxu0
      %v583 = vadd.f32 %v472, %v582
      %v584 = vpop.f32.mrb[0].mxu0
      %585 = vmatprep.mubr.bf16.mxu0 0
      %586 = vmatmul.mubr.bf16.gmra.mrb[0].mxu0 %v447
      %v587 = vpop.f32.mrb[0].mxu0
      %v588 = vadd.f32 %v472, %v587
      %v589 = vpop.f32.mrb[0].mxu0
      %v590 = vpop.f32.mrb[0].mxu0
      %v591 = vadd.f32 %v472, %v590
      %v592 = vpop.f32.mrb[0].mxu0
      %593 = vmatprep.mubr.bf16.mxu0 0
      %594 = vmatmul.mubr.bf16.gmra.mrb[0].mxu0 %v448
      %v595 = vpop.f32.mrb[0].mxu0
      %v596 = vadd.f32 %v472, %v595
      %v597 = vpop.f32.mrb[0].mxu0
      %v598 = vpop.f32.mrb[0].mxu0
      %v599 = vadd.f32 %v472, %v598
      %v600 = vpop.f32.mrb[0].mxu0
      %601 = vmatprep.mubr.bf16.mxu0 0
      %602 = vmatmul.mubr.bf16.gmra.mrb[0].mxu0 %v449
      %v603 = vpop.f32.mrb[0].mxu0
      %v604 = vadd.f32 %v472, %v603
      %v605 = vpop.f32.mrb[0].mxu0
      %v606 = vpop.f32.mrb[0].mxu0
      %v607 = vadd.f32 %v472, %v606
      %v608 = vpop.f32.mrb[0].mxu0
      %609 = vmatprep.mubr.bf16.mxu0 0
      %610 = vmatmul.mubr.bf16.gmra.mrb[0].mxu0 %v450
      %v611 = vpop.f32.mrb[0].mxu0
      %v612 = vadd.f32 %v472, %v611
      %v613 = vpop.f32.mrb[0].mxu0
      %v614 = vpop.f32.mrb[0].mxu0
      %v615 = vadd.f32 %v472, %v614
      %v616 = vpop.f32.mrb[0].mxu0
      %617 = vdwg.mxu0
      %vm618 = vcmp.ge.f32.partialorder %v556, 0.0
      %vm619 = vcmp.ge.f32.partialorder %v559, 0.0
      %vm620 = vcmp.ge.f32.partialorder %v564, 0.0
      %vm621 = vcmp.ge.f32.partialorder %v567, 0.0
      %vm622 = vcmp.ge.f32.partialorder %v572, 0.0
      %vm623 = vcmp.ge.f32.partialorder %v575, 0.0
      %vm624 = vcmp.ge.f32.partialorder %v580, 0.0
      %vm625 = vcmp.ge.f32.partialorder %v583, 0.0
      %vm626 = vcmp.ge.f32.partialorder %v588, 0.0
      %vm627 = vcmp.ge.f32.partialorder %v591, 0.0
      %vm628 = vcmp.ge.f32.partialorder %v596, 0.0
      %vm629 = vcmp.ge.f32.partialorder %v599, 0.0
      %vm630 = vcmp.ge.f32.partialorder %v604, 0.0
      %vm631 = vcmp.ge.f32.partialorder %v607, 0.0
      %vm632 = vcmp.ge.f32.partialorder %v612, 0.0
      %vm633 = vcmp.ge.f32.partialorder %v615, 0.0
      %v634 = vmul.f32 %v556, 0.1
      %v635 = vmul.f32 %v559, 0.1
      %v636 = vmul.f32 %v564, 0.1
      %v637 = vmul.f32 %v567, 0.1
      %v638 = vmul.f32 %v572, 0.1
      %v639 = vmul.f32 %v575, 0.1
      %v640 = vmul.f32 %v580, 0.1
      %v641 = vmul.f32 %v583, 0.1
      %v642 = vmul.f32 %v588, 0.1
      %v643 = vmul.f32 %v591, 0.1
      %v644 = vmul.f32 %v596, 0.1
      %v645 = vmul.f32 %v599, 0.1
      %v646 = vmul.f32 %v604, 0.1
      %v647 = vmul.f32 %v607, 0.1
      %v648 = vmul.f32 %v612, 0.1
      %v649 = vmul.f32 %v615, 0.1
      %v650 = vsel %vm618, %v556, %v634
      %v651 = vsel %vm619, %v559, %v635
      %v652 = vsel %vm620, %v564, %v636
      %v653 = vsel %vm621, %v567, %v637
      %v654 = vsel %vm622, %v572, %v638
      %v655 = vsel %vm623, %v575, %v639
      %v656 = vsel %vm624, %v580, %v640
      %v657 = vsel %vm625, %v583, %v641
      %v658 = vsel %vm626, %v588, %v642
      %v659 = vsel %vm627, %v591, %v643
      %v660 = vsel %vm628, %v596, %v644
      %v661 = vsel %vm629, %v599, %v645
      %v662 = vsel %vm630, %v604, %v646
      %v663 = vsel %vm631, %v607, %v647
      %v664 = vsel %vm632, %v612, %v648
      %v665 = vsel %vm633, %v615, %v649
      %v666 = vpack.c.bf16 %v651, %v650
      %v667 = vpack.c.bf16 %v653, %v652
      %v668 = vpack.c.bf16 %v655, %v654
      %v669 = vpack.c.bf16 %v657, %v656
      %v670 = vpack.c.bf16 %v659, %v658
      %v671 = vpack.c.bf16 %v661, %v660
      %v672 = vpack.c.bf16 %v663, %v662
      %v673 = vpack.c.bf16 %v665, %v664
      %v674 = vld [vmem:[#allocation8 + $0x40] sm:$0xf]
      %v675 = vld [vmem:[#allocation8 + $0x44] sm:$0xf]
      %v676 = vld [vmem:[#allocation8 + $0x48] sm:$0xf]
      %v677 = vld [vmem:[#allocation8 + $0x4c] sm:$0xf]
      %v678 = vld [vmem:[#allocation8 + $0x50] sm:$0xf]
      %v679 = vld [vmem:[#allocation8 + $0x54] sm:$0xf]
      %v680 = vld [vmem:[#allocation8 + $0x58] sm:$0xf]
      %v681 = vld [vmem:[#allocation8 + $0x5c] sm:$0xf]
      %v682 = vld [vmem:[#allocation8 + $0x60] sm:$0xf]
      %v683 = vld [vmem:[#allocation8 + $0x64] sm:$0xf]
      %v684 = vld [vmem:[#allocation8 + $0x68] sm:$0xf]
      %v685 = vld [vmem:[#allocation8 + $0x6c] sm:$0xf]
      %v686 = vld [vmem:[#allocation8 + $0x70] sm:$0xf]
      %v687 = vld [vmem:[#allocation8 + $0x74] sm:$0xf]
      %v688 = vld [vmem:[#allocation8 + $0x78] sm:$0xf]
      %v689 = vld [vmem:[#allocation8 + $0x7c] sm:$0xf]
      %v690 = vlaneseq
      %v691 = vshrl.u32 %v690, 7
      %v692 = vsub.s32 1, %v691
      %v693 = vrot.slane %v468, %v692
      %v710 = vunpack.c.l.b16 %v674
      %v711 = vunpack.c.l.b16 %v675
      %v712 = vunpack.c.l.b16 %v676
      %v713 = vunpack.c.l.b16 %v677
      %v714 = vunpack.c.l.b16 %v678
      %v715 = vunpack.c.l.b16 %v679
      %v716 = vunpack.c.l.b16 %v680
      %v717 = vunpack.c.l.b16 %v681
      %v718 = vunpack.c.l.b16 %v682
      %v719 = vunpack.c.l.b16 %v683
      %v720 = vunpack.c.l.b16 %v684
      %v721 = vunpack.c.l.b16 %v685
      %v722 = vunpack.c.l.b16 %v686
      %v723 = vunpack.c.l.b16 %v687
      %v724 = vunpack.c.l.b16 %v688
      %v725 = vunpack.c.l.b16 %v689
      %v726 = vpack.c.b16 %v711, %v710
      %v727 = vpack.c.b16 %v713, %v712
      %v728 = vpack.c.b16 %v715, %v714
      %v729 = vpack.c.b16 %v717, %v716
      %v730 = vpack.c.b16 %v719, %v718
      %v731 = vpack.c.b16 %v721, %v720
      %v732 = vpack.c.b16 %v723, %v722
      %v733 = vpack.c.b16 %v725, %v724
      %742 = vmatprep.subr.bf16.mxu0 0
      %743 = vmatpush1.bf16.msra.mxu0 %v726
      %744 = vmatprep.subr.bf16.mxu0 0
      %745 = vmatpush1.bf16.msra.mxu0 %v727
      %746 = vmatprep.subr.bf16.mxu0 0
      %747 = vmatpush1.bf16.msra.mxu0 %v728
      %748 = vmatprep.subr.bf16.mxu0 0
      %749 = vmatpush1.bf16.msra.mxu0 %v729
      %750 = vmatprep.subr.bf16.mxu0 0
      %751 = vmatpush1.bf16.msra.mxu0 %v730
      %752 = vmatprep.subr.bf16.mxu0 0
      %753 = vmatpush1.bf16.msra.mxu0 %v731
      %754 = vmatprep.subr.bf16.mxu0 0
      %755 = vmatpush1.bf16.msra.mxu0 %v732
      %756 = vmatprep.subr.bf16.mxu0 0
      %757 = vmatpush1.bf16.msra.mxu0 %v733
      %758 = vmatprep.subr.bf16.mxu0 0
      %759 = vmatpush1.bf16.msra.mxu0 0
      %760 = vmatprep.subr.bf16.mxu0 0
      %761 = vmatpush1.bf16.msra.mxu0 0
      %762 = vmatprep.subr.bf16.mxu0 0
      %763 = vmatpush1.bf16.msra.mxu0 0
      %764 = vmatprep.subr.bf16.mxu0 0
      %765 = vmatpush1.bf16.msra.mxu0 0
      %766 = vmatprep.subr.bf16.mxu0 0
      %767 = vmatpush1.bf16.msra.mxu0 0
      %768 = vmatprep.subr.bf16.mxu0 0
      %769 = vmatpush1.bf16.msra.mxu0 0
      %770 = vmatprep.subr.bf16.mxu0 0
      %771 = vmatpush1.bf16.msra.mxu0 0
      %772 = vmatprep.subr.bf16.mxu0 0
      %773 = vmatpush1.bf16.msra.mxu0 0
      %774 = vmatprep.mubr.bf16.mxu0 0
      %775 = vmatmul.mubr.bf16.gmra.mrb[0].mxu0 %v666
      %v776 = vpop.f32.mrb[0].mxu0
      %v777 = vadd.f32 %v693, %v776
      %v778 = vpop.f32.mrb[0].mxu0
      %v779 = vpop.f32.mrb[0].mxu0
      %v780 = vadd.f32 %v693, %v779
      %v781 = vpop.f32.mrb[0].mxu0
      %782 = vmatprep.mubr.bf16.mxu0 0
      %783 = vmatmul.mubr.bf16.gmra.mrb[0].mxu0 %v667
      %v784 = vpop.f32.mrb[0].mxu0
      %v785 = vadd.f32 %v693, %v784
      %v786 = vpop.f32.mrb[0].mxu0
      %v787 = vpop.f32.mrb[0].mxu0
      %v788 = vadd.f32 %v693, %v787
      %v789 = vpop.f32.mrb[0].mxu0
      %790 = vmatprep.mubr.bf16.mxu0 0
      %791 = vmatmul.mubr.bf16.gmra.mrb[0].mxu0 %v668
      %v792 = vpop.f32.mrb[0].mxu0
      %v793 = vadd.f32 %v693, %v792
      %v794 = vpop.f32.mrb[0].mxu0
      %v795 = vpop.f32.mrb[0].mxu0
      %v796 = vadd.f32 %v693, %v795
      %v797 = vpop.f32.mrb[0].mxu0
      %798 = vmatprep.mubr.bf16.mxu0 0
      %799 = vmatmul.mubr.bf16.gmra.mrb[0].mxu0 %v669
      %v800 = vpop.f32.mrb[0].mxu0
      %v801 = vadd.f32 %v693, %v800
      %v802 = vpop.f32.mrb[0].mxu0
      %v803 = vpop.f32.mrb[0].mxu0
      %v804 = vadd.f32 %v693, %v803
      %v805 = vpop.f32.mrb[0].mxu0
      %806 = vmatprep.mubr.bf16.mxu0 0
      %807 = vmatmul.mubr.bf16.gmra.mrb[0].mxu0 %v670
      %v808 = vpop.f32.mrb[0].mxu0
      %v809 = vadd.f32 %v693, %v808
      %v810 = vpop.f32.mrb[0].mxu0
      %v811 = vpop.f32.mrb[0].mxu0
      %v812 = vadd.f32 %v693, %v811
      %v813 = vpop.f32.mrb[0].mxu0
      %814 = vmatprep.mubr.bf16.mxu0 0
      %815 = vmatmul.mubr.bf16.gmra.mrb[0].mxu0 %v671
      %v816 = vpop.f32.mrb[0].mxu0
      %v817 = vadd.f32 %v693, %v816
      %v818 = vpop.f32.mrb[0].mxu0
      %v819 = vpop.f32.mrb[0].mxu0
      %v820 = vadd.f32 %v693, %v819
      %v821 = vpop.f32.mrb[0].mxu0
      %822 = vmatprep.mubr.bf16.mxu0 0
      %823 = vmatmul.mubr.bf16.gmra.mrb[0].mxu0 %v672
      %v824 = vpop.f32.mrb[0].mxu0
      %v825 = vadd.f32 %v693, %v824
      %v826 = vpop.f32.mrb[0].mxu0
      %v827 = vpop.f32.mrb[0].mxu0
      %v828 = vadd.f32 %v693, %v827
      %v829 = vpop.f32.mrb[0].mxu0
      %830 = vmatprep.mubr.bf16.mxu0 0
      %831 = vmatmul.mubr.bf16.gmra.mrb[0].mxu0 %v673
      %v832 = vpop.f32.mrb[0].mxu0
      %v833 = vadd.f32 %v693, %v832
      %v834 = vpop.f32.mrb[0].mxu0
      %v835 = vpop.f32.mrb[0].mxu0
      %v836 = vadd.f32 %v693, %v835
      %v837 = vpop.f32.mrb[0].mxu0
      %838 = vdwg.mxu0
      %vm839 = vcmp.ge.f32.partialorder %v777, 0.0
      %vm840 = vcmp.ge.f32.partialorder %v780, 0.0
      %vm841 = vcmp.ge.f32.partialorder %v785, 0.0
      %vm842 = vcmp.ge.f32.partialorder %v788, 0.0
      %vm843 = vcmp.ge.f32.partialorder %v793, 0.0
      %vm844 = vcmp.ge.f32.partialorder %v796, 0.0
      %vm845 = vcmp.ge.f32.partialorder %v801, 0.0
      %vm846 = vcmp.ge.f32.partialorder %v804, 0.0
      %vm847 = vcmp.ge.f32.partialorder %v809, 0.0
      %vm848 = vcmp.ge.f32.partialorder %v812, 0.0
      %vm849 = vcmp.ge.f32.partialorder %v817, 0.0
      %vm850 = vcmp.ge.f32.partialorder %v820, 0.0
      %vm851 = vcmp.ge.f32.partialorder %v825, 0.0
      %vm852 = vcmp.ge.f32.partialorder %v828, 0.0
      %vm853 = vcmp.ge.f32.partialorder %v833, 0.0
      %vm854 = vcmp.ge.f32.partialorder %v836, 0.0
      %v855 = vmul.f32 %v777, 0.1
      %v856 = vmul.f32 %v780, 0.1
      %v857 = vmul.f32 %v785, 0.1
      %v858 = vmul.f32 %v788, 0.1
      %v859 = vmul.f32 %v793, 0.1
      %v860 = vmul.f32 %v796, 0.1
      %v861 = vmul.f32 %v801, 0.1
      %v862 = vmul.f32 %v804, 0.1
      %v863 = vmul.f32 %v809, 0.1
      %v864 = vmul.f32 %v812, 0.1
      %v865 = vmul.f32 %v817, 0.1
      %v866 = vmul.f32 %v820, 0.1
      %v867 = vmul.f32 %v825, 0.1
      %v868 = vmul.f32 %v828, 0.1
      %v869 = vmul.f32 %v833, 0.1
      %v870 = vmul.f32 %v836, 0.1
      %v871 = vsel %vm839, %v777, %v855
      %v872 = vsel %vm840, %v780, %v856
      %v873 = vsel %vm841, %v785, %v857
      %v874 = vsel %vm842, %v788, %v858
      %v875 = vsel %vm843, %v793, %v859
      %v876 = vsel %vm844, %v796, %v860
      %v877 = vsel %vm845, %v801, %v861
      %v878 = vsel %vm846, %v804, %v862
      %v879 = vsel %vm847, %v809, %v863
      %v880 = vsel %vm848, %v812, %v864
      %v881 = vsel %vm849, %v817, %v865
      %v882 = vsel %vm850, %v820, %v866
      %v883 = vsel %vm851, %v825, %v867
      %v884 = vsel %vm852, %v828, %v868
      %v885 = vsel %vm853, %v833, %v869
      %v886 = vsel %vm854, %v836, %v870
      %v887 = vpack.c.bf16 %v872, %v871
      %v888 = vpack.c.bf16 %v874, %v873
      %v889 = vpack.c.bf16 %v876, %v875
      %v890 = vpack.c.bf16 %v878, %v877
      %v891 = vpack.c.bf16 %v880, %v879
      %v892 = vpack.c.bf16 %v882, %v881
      %v893 = vpack.c.bf16 %v884, %v883
      %v894 = vpack.c.bf16 %v886, %v885
      %v895 = vld [vmem:[#allocation8 + $0x80] sm:$0xf]
      %v896 = vld [vmem:[#allocation8 + $0x84] sm:$0xf]
      %v897 = vld [vmem:[#allocation8 + $0x88] sm:$0xf]
      %v898 = vld [vmem:[#allocation8 + $0x8c] sm:$0xf]
      %v899 = vld [vmem:[#allocation8 + $0x90] sm:$0xf]
      %v900 = vld [vmem:[#allocation8 + $0x94] sm:$0xf]
      %v901 = vld [vmem:[#allocation8 + $0x98] sm:$0xf]
      %v902 = vld [vmem:[#allocation8 + $0x9c] sm:$0xf]
      %v903 = vld [vmem:[#allocation8 + $0xa0] sm:$0xf]
      %v904 = vld [vmem:[#allocation8 + $0xa4] sm:$0xf]
      %v905 = vld [vmem:[#allocation8 + $0xa8] sm:$0xf]
      %v906 = vld [vmem:[#allocation8 + $0xac] sm:$0xf]
      %v907 = vld [vmem:[#allocation8 + $0xb0] sm:$0xf]
      %v908 = vld [vmem:[#allocation8 + $0xb4] sm:$0xf]
      %v909 = vld [vmem:[#allocation8 + $0xb8] sm:$0xf]
      %v910 = vld [vmem:[#allocation8 + $0xbc] sm:$0xf]
      %v911 = vld [vmem:[#allocation8 + $0x100] sm:$0x2]
      %v912 = vunpack.c.l.bf16 %v911
      %v913 = vlaneseq
      %v914 = vshrl.u32 %v913, 7
      %v915 = vsub.s32 2, %v914
      %v916 = vrot.slane %v912, %v915
      %v933 = vunpack.c.l.b16 %v895
      %v934 = vunpack.c.l.b16 %v896
      %v935 = vunpack.c.l.b16 %v897
      %v936 = vunpack.c.l.b16 %v898
      %v937 = vunpack.c.l.b16 %v899
      %v938 = vunpack.c.l.b16 %v900
      %v939 = vunpack.c.l.b16 %v901
      %v940 = vunpack.c.l.b16 %v902
      %v941 = vunpack.c.l.b16 %v903
      %v942 = vunpack.c.l.b16 %v904
      %v943 = vunpack.c.l.b16 %v905
      %v944 = vunpack.c.l.b16 %v906
      %v945 = vunpack.c.l.b16 %v907
      %v946 = vunpack.c.l.b16 %v908
      %v947 = vunpack.c.l.b16 %v909
      %v948 = vunpack.c.l.b16 %v910
      %v949 = vpack.c.b16 %v934, %v933
      %v950 = vpack.c.b16 %v936, %v935
      %v951 = vpack.c.b16 %v938, %v937
      %v952 = vpack.c.b16 %v940, %v939
      %v953 = vpack.c.b16 %v942, %v941
      %v954 = vpack.c.b16 %v944, %v943
      %v955 = vpack.c.b16 %v946, %v945
      %v956 = vpack.c.b16 %v948, %v947
      %965 = vmatprep.subr.bf16.mxu0 0
      %966 = vmatpush1.bf16.msra.mxu0 %v949
      %967 = vmatprep.subr.bf16.mxu0 0
      %968 = vmatpush1.bf16.msra.mxu0 %v950
      %969 = vmatprep.subr.bf16.mxu0 0
      %970 = vmatpush1.bf16.msra.mxu0 %v951
      %971 = vmatprep.subr.bf16.mxu0 0
      %972 = vmatpush1.bf16.msra.mxu0 %v952
      %973 = vmatprep.subr.bf16.mxu0 0
      %974 = vmatpush1.bf16.msra.mxu0 %v953
      %975 = vmatprep.subr.bf16.mxu0 0
      %976 = vmatpush1.bf16.msra.mxu0 %v954
      %977 = vmatprep.subr.bf16.mxu0 0
      %978 = vmatpush1.bf16.msra.mxu0 %v955
      %979 = vmatprep.subr.bf16.mxu0 0
      %980 = vmatpush1.bf16.msra.mxu0 %v956
      %981 = vmatprep.subr.bf16.mxu0 0
      %982 = vmatpush1.bf16.msra.mxu0 0
      %983 = vmatprep.subr.bf16.mxu0 0
      %984 = vmatpush1.bf16.msra.mxu0 0
      %985 = vmatprep.subr.bf16.mxu0 0
      %986 = vmatpush1.bf16.msra.mxu0 0
      %987 = vmatprep.subr.bf16.mxu0 0
      %988 = vmatpush1.bf16.msra.mxu0 0
      %989 = vmatprep.subr.bf16.mxu0 0
      %990 = vmatpush1.bf16.msra.mxu0 0
      %991 = vmatprep.subr.bf16.mxu0 0
      %992 = vmatpush1.bf16.msra.mxu0 0
      %993 = vmatprep.subr.bf16.mxu0 0
      %994 = vmatpush1.bf16.msra.mxu0 0
      %995 = vmatprep.subr.bf16.mxu0 0
      %996 = vmatpush1.bf16.msra.mxu0 0
      %997 = vmatprep.mubr.bf16.mxu0 0
      %998 = vmatmul.mubr.bf16.gmra.mrb[0].mxu0 %v887
      %v999 = vpop.f32.mrb[0].mxu0
      %v1000 = vadd.f32 %v916, %v999
      %v1001 = vpop.f32.mrb[0].mxu0
      %v1002 = vpop.f32.mrb[0].mxu0
      %v1003 = vadd.f32 %v916, %v1002
      %v1004 = vpop.f32.mrb[0].mxu0
      %1005 = vmatprep.mubr.bf16.mxu0 0
      %1006 = vmatmul.mubr.bf16.gmra.mrb[0].mxu0 %v888
      %v1007 = vpop.f32.mrb[0].mxu0
      %v1008 = vadd.f32 %v916, %v1007
      %v1009 = vpop.f32.mrb[0].mxu0
      %v1010 = vpop.f32.mrb[0].mxu0
      %v1011 = vadd.f32 %v916, %v1010
      %v1012 = vpop.f32.mrb[0].mxu0
      %1013 = vmatprep.mubr.bf16.mxu0 0
      %1014 = vmatmul.mubr.bf16.gmra.mrb[0].mxu0 %v889
      %v1015 = vpop.f32.mrb[0].mxu0
      %v1016 = vadd.f32 %v916, %v1015
      %v1017 = vpop.f32.mrb[0].mxu0
      %v1018 = vpop.f32.mrb[0].mxu0
      %v1019 = vadd.f32 %v916, %v1018
      %v1020 = vpop.f32.mrb[0].mxu0
      %1021 = vmatprep.mubr.bf16.mxu0 0
      %1022 = vmatmul.mubr.bf16.gmra.mrb[0].mxu0 %v890
      %v1023 = vpop.f32.mrb[0].mxu0
      %v1024 = vadd.f32 %v916, %v1023
      %v1025 = vpop.f32.mrb[0].mxu0
      %v1026 = vpop.f32.mrb[0].mxu0
      %v1027 = vadd.f32 %v916, %v1026
      %v1028 = vpop.f32.mrb[0].mxu0
      %1029 = vmatprep.mubr.bf16.mxu0 0
      %1030 = vmatmul.mubr.bf16.gmra.mrb[0].mxu0 %v891
      %v1031 = vpop.f32.mrb[0].mxu0
      %v1032 = vadd.f32 %v916, %v1031
      %v1033 = vpop.f32.mrb[0].mxu0
      %v1034 = vpop.f32.mrb[0].mxu0
      %v1035 = vadd.f32 %v916, %v1034
      %v1036 = vpop.f32.mrb[0].mxu0
      %1037 = vmatprep.mubr.bf16.mxu0 0
      %1038 = vmatmul.mubr.bf16.gmra.mrb[0].mxu0 %v892
      %v1039 = vpop.f32.mrb[0].mxu0
      %v1040 = vadd.f32 %v916, %v1039
      %v1041 = vpop.f32.mrb[0].mxu0
      %v1042 = vpop.f32.mrb[0].mxu0
      %v1043 = vadd.f32 %v916, %v1042
      %v1044 = vpop.f32.mrb[0].mxu0
      %1045 = vmatprep.mubr.bf16.mxu0 0
      %1046 = vmatmul.mubr.bf16.gmra.mrb[0].mxu0 %v893
      %v1047 = vpop.f32.mrb[0].mxu0
      %v1048 = vadd.f32 %v916, %v1047
      %v1049 = vpop.f32.mrb[0].mxu0
      %v1050 = vpop.f32.mrb[0].mxu0
      %v1051 = vadd.f32 %v916, %v1050
      %v1052 = vpop.f32.mrb[0].mxu0
      %1053 = vmatprep.mubr.bf16.mxu0 0
      %1054 = vmatmul.mubr.bf16.gmra.mrb[0].mxu0 %v894
      %v1055 = vpop.f32.mrb[0].mxu0
      %v1056 = vadd.f32 %v916, %v1055
      %v1057 = vpop.f32.mrb[0].mxu0
      %v1058 = vpop.f32.mrb[0].mxu0
      %v1059 = vadd.f32 %v916, %v1058
      %v1060 = vpop.f32.mrb[0].mxu0
      %1061 = vdwg.mxu0
      %vm1062 = vcmp.ge.f32.partialorder %v1000, 0.0
      %vm1063 = vcmp.ge.f32.partialorder %v1003, 0.0
      %vm1064 = vcmp.ge.f32.partialorder %v1008, 0.0
      %vm1065 = vcmp.ge.f32.partialorder %v1011, 0.0
      %vm1066 = vcmp.ge.f32.partialorder %v1016, 0.0
      %vm1067 = vcmp.ge.f32.partialorder %v1019, 0.0
      %vm1068 = vcmp.ge.f32.partialorder %v1024, 0.0
      %vm1069 = vcmp.ge.f32.partialorder %v1027, 0.0
      %vm1070 = vcmp.ge.f32.partialorder %v1032, 0.0
      %vm1071 = vcmp.ge.f32.partialorder %v1035, 0.0
      %vm1072 = vcmp.ge.f32.partialorder %v1040, 0.0
      %vm1073 = vcmp.ge.f32.partialorder %v1043, 0.0
      %vm1074 = vcmp.ge.f32.partialorder %v1048, 0.0
      %vm1075 = vcmp.ge.f32.partialorder %v1051, 0.0
      %vm1076 = vcmp.ge.f32.partialorder %v1056, 0.0
      %vm1077 = vcmp.ge.f32.partialorder %v1059, 0.0
      %v1078 = vmul.f32 %v1000, 0.1
      %v1079 = vmul.f32 %v1003, 0.1
      %v1080 = vmul.f32 %v1008, 0.1
      %v1081 = vmul.f32 %v1011, 0.1
      %v1082 = vmul.f32 %v1016, 0.1
      %v1083 = vmul.f32 %v1019, 0.1
      %v1084 = vmul.f32 %v1024, 0.1
      %v1085 = vmul.f32 %v1027, 0.1
      %v1086 = vmul.f32 %v1032, 0.1
      %v1087 = vmul.f32 %v1035, 0.1
      %v1088 = vmul.f32 %v1040, 0.1
      %v1089 = vmul.f32 %v1043, 0.1
      %v1090 = vmul.f32 %v1048, 0.1
      %v1091 = vmul.f32 %v1051, 0.1
      %v1092 = vmul.f32 %v1056, 0.1
      %v1093 = vmul.f32 %v1059, 0.1
      %v1094 = vsel %vm1062, %v1000, %v1078
      %v1095 = vsel %vm1063, %v1003, %v1079
      %v1096 = vsel %vm1064, %v1008, %v1080
      %v1097 = vsel %vm1065, %v1011, %v1081
      %v1098 = vsel %vm1066, %v1016, %v1082
      %v1099 = vsel %vm1067, %v1019, %v1083
      %v1100 = vsel %vm1068, %v1024, %v1084
      %v1101 = vsel %vm1069, %v1027, %v1085
      %v1102 = vsel %vm1070, %v1032, %v1086
      %v1103 = vsel %vm1071, %v1035, %v1087
      %v1104 = vsel %vm1072, %v1040, %v1088
      %v1105 = vsel %vm1073, %v1043, %v1089
      %v1106 = vsel %vm1074, %v1048, %v1090
      %v1107 = vsel %vm1075, %v1051, %v1091
      %v1108 = vsel %vm1076, %v1056, %v1092
      %v1109 = vsel %vm1077, %v1059, %v1093
      %v1110 = vpack.c.bf16 %v1095, %v1094
      %v1111 = vpack.c.bf16 %v1097, %v1096
      %v1112 = vpack.c.bf16 %v1099, %v1098
      %v1113 = vpack.c.bf16 %v1101, %v1100
      %v1114 = vpack.c.bf16 %v1103, %v1102
      %v1115 = vpack.c.bf16 %v1105, %v1104
      %v1116 = vpack.c.bf16 %v1107, %v1106
      %v1117 = vpack.c.bf16 %v1109, %v1108
      %v1118 = vld [vmem:[#allocation8 + $0xc0] sm:$0xf]
      %v1119 = vld [vmem:[#allocation8 + $0xc4] sm:$0xf]
      %v1120 = vld [vmem:[#allocation8 + $0xc8] sm:$0xf]
      %v1121 = vld [vmem:[#allocation8 + $0xcc] sm:$0xf]
      %v1122 = vld [vmem:[#allocation8 + $0xd0] sm:$0xf]
      %v1123 = vld [vmem:[#allocation8 + $0xd4] sm:$0xf]
      %v1124 = vld [vmem:[#allocation8 + $0xd8] sm:$0xf]
      %v1125 = vld [vmem:[#allocation8 + $0xdc] sm:$0xf]
      %v1126 = vld [vmem:[#allocation8 + $0xe0] sm:$0xf]
      %v1127 = vld [vmem:[#allocation8 + $0xe4] sm:$0xf]
      %v1128 = vld [vmem:[#allocation8 + $0xe8] sm:$0xf]
      %v1129 = vld [vmem:[#allocation8 + $0xec] sm:$0xf]
      %v1130 = vld [vmem:[#allocation8 + $0xf0] sm:$0xf]
      %v1131 = vld [vmem:[#allocation8 + $0xf4] sm:$0xf]
      %v1132 = vld [vmem:[#allocation8 + $0xf8] sm:$0xf]
      %v1133 = vld [vmem:[#allocation8 + $0xfc] sm:$0xf]
      %v1134 = vlaneseq
      %v1135 = vshrl.u32 %v1134, 7
      %v1136 = vsub.s32 3, %v1135
      %v1137 = vrot.slane %v912, %v1136
      %v1154 = vunpack.c.l.b16 %v1118
      %v1155 = vunpack.c.l.b16 %v1119
      %v1156 = vunpack.c.l.b16 %v1120
      %v1157 = vunpack.c.l.b16 %v1121
      %v1158 = vunpack.c.l.b16 %v1122
      %v1159 = vunpack.c.l.b16 %v1123
      %v1160 = vunpack.c.l.b16 %v1124
      %v1161 = vunpack.c.l.b16 %v1125
      %v1162 = vunpack.c.l.b16 %v1126
      %v1163 = vunpack.c.l.b16 %v1127
      %v1164 = vunpack.c.l.b16 %v1128
      %v1165 = vunpack.c.l.b16 %v1129
      %v1166 = vunpack.c.l.b16 %v1130
      %v1167 = vunpack.c.l.b16 %v1131
      %v1168 = vunpack.c.l.b16 %v1132
      %v1169 = vunpack.c.l.b16 %v1133
      %v1170 = vpack.c.b16 %v1155, %v1154
      %v1171 = vpack.c.b16 %v1157, %v1156
      %v1172 = vpack.c.b16 %v1159, %v1158
      %v1173 = vpack.c.b16 %v1161, %v1160
      %v1174 = vpack.c.b16 %v1163, %v1162
      %v1175 = vpack.c.b16 %v1165, %v1164
      %v1176 = vpack.c.b16 %v1167, %v1166
      %v1177 = vpack.c.b16 %v1169, %v1168
      %1186 = vmatprep.subr.bf16.mxu0 0
      %1187 = vmatpush1.bf16.msra.mxu0 %v1170
      %1188 = vmatprep.subr.bf16.mxu0 0
      %1189 = vmatpush1.bf16.msra.mxu0 %v1171
      %1190 = vmatprep.subr.bf16.mxu0 0
      %1191 = vmatpush1.bf16.msra.mxu0 %v1172
      %1192 = vmatprep.subr.bf16.mxu0 0
      %1193 = vmatpush1.bf16.msra.mxu0 %v1173
      %1194 = vmatprep.subr.bf16.mxu0 0
      %1195 = vmatpush1.bf16.msra.mxu0 %v1174
      %1196 = vmatprep.subr.bf16.mxu0 0
      %1197 = vmatpush1.bf16.msra.mxu0 %v1175
      %1198 = vmatprep.subr.bf16.mxu0 0
      %1199 = vmatpush1.bf16.msra.mxu0 %v1176
      %1200 = vmatprep.subr.bf16.mxu0 0
      %1201 = vmatpush1.bf16.msra.mxu0 %v1177
      %1202 = vmatprep.subr.bf16.mxu0 0
      %1203 = vmatpush1.bf16.msra.mxu0 0
      %1204 = vmatprep.subr.bf16.mxu0 0
      %1205 = vmatpush1.bf16.msra.mxu0 0
      %1206 = vmatprep.subr.bf16.mxu0 0
      %1207 = vmatpush1.bf16.msra.mxu0 0
      %1208 = vmatprep.subr.bf16.mxu0 0
      %1209 = vmatpush1.bf16.msra.mxu0 0
      %1210 = vmatprep.subr.bf16.mxu0 0
      %1211 = vmatpush1.bf16.msra.mxu0 0
      %1212 = vmatprep.subr.bf16.mxu0 0
      %1213 = vmatpush1.bf16.msra.mxu0 0
      %1214 = vmatprep.subr.bf16.mxu0 0
      %1215 = vmatpush1.bf16.msra.mxu0 0
      %1216 = vmatprep.subr.bf16.mxu0 0
      %1217 = vmatpush1.bf16.msra.mxu0 0
      %1218 = vmatprep.mubr.bf16.mxu0 0
      %1219 = vmatmul.mubr.bf16.gmra.mrb[0].mxu0 %v1110
      %v1220 = vpop.f32.mrb[0].mxu0
      %v1221 = vadd.f32 %v1137, %v1220
      %v1222 = vpop.f32.mrb[0].mxu0
      %v1223 = vpop.f32.mrb[0].mxu0
      %v1224 = vadd.f32 %v1137, %v1223
      %v1225 = vpop.f32.mrb[0].mxu0
      %1226 = vmatprep.mubr.bf16.mxu0 0
      %1227 = vmatmul.mubr.bf16.gmra.mrb[0].mxu0 %v1111
      %v1228 = vpop.f32.mrb[0].mxu0
      %v1229 = vadd.f32 %v1137, %v1228
      %v1230 = vpop.f32.mrb[0].mxu0
      %v1231 = vpop.f32.mrb[0].mxu0
      %v1232 = vadd.f32 %v1137, %v1231
      %v1233 = vpop.f32.mrb[0].mxu0
      %1234 = vmatprep.mubr.bf16.mxu0 0
      %1235 = vmatmul.mubr.bf16.gmra.mrb[0].mxu0 %v1112
      %v1236 = vpop.f32.mrb[0].mxu0
      %v1237 = vadd.f32 %v1137, %v1236
      %v1238 = vpop.f32.mrb[0].mxu0
      %v1239 = vpop.f32.mrb[0].mxu0
      %v1240 = vadd.f32 %v1137, %v1239
      %v1241 = vpop.f32.mrb[0].mxu0
      %1242 = vmatprep.mubr.bf16.mxu0 0
      %1243 = vmatmul.mubr.bf16.gmra.mrb[0].mxu0 %v1113
      %v1244 = vpop.f32.mrb[0].mxu0
      %v1245 = vadd.f32 %v1137, %v1244
      %v1246 = vpop.f32.mrb[0].mxu0
      %v1247 = vpop.f32.mrb[0].mxu0
      %v1248 = vadd.f32 %v1137, %v1247
      %v1249 = vpop.f32.mrb[0].mxu0
      %1250 = vmatprep.mubr.bf16.mxu0 0
      %1251 = vmatmul.mubr.bf16.gmra.mrb[0].mxu0 %v1114
      %v1252 = vpop.f32.mrb[0].mxu0
      %v1253 = vadd.f32 %v1137, %v1252
      %v1254 = vpop.f32.mrb[0].mxu0
      %v1255 = vpop.f32.mrb[0].mxu0
      %v1256 = vadd.f32 %v1137, %v1255
      %v1257 = vpop.f32.mrb[0].mxu0
      %1258 = vmatprep.mubr.bf16.mxu0 0
      %1259 = vmatmul.mubr.bf16.gmra.mrb[0].mxu0 %v1115
      %v1260 = vpop.f32.mrb[0].mxu0
      %v1261 = vadd.f32 %v1137, %v1260
      %v1262 = vpop.f32.mrb[0].mxu0
      %v1263 = vpop.f32.mrb[0].mxu0
      %v1264 = vadd.f32 %v1137, %v1263
      %v1265 = vpop.f32.mrb[0].mxu0
      %1266 = vmatprep.mubr.bf16.mxu0 0
      %1267 = vmatmul.mubr.bf16.gmra.mrb[0].mxu0 %v1116
      %v1268 = vpop.f32.mrb[0].mxu0
      %v1269 = vadd.f32 %v1137, %v1268
      %v1270 = vpop.f32.mrb[0].mxu0
      %v1271 = vpop.f32.mrb[0].mxu0
      %v1272 = vadd.f32 %v1137, %v1271
      %v1273 = vpop.f32.mrb[0].mxu0
      %1274 = vmatprep.mubr.bf16.mxu0 0
      %1275 = vmatmul.mubr.bf16.gmra.mrb[0].mxu0 %v1117
      %v1276 = vpop.f32.mrb[0].mxu0
      %v1277 = vadd.f32 %v1137, %v1276
      %v1278 = vpop.f32.mrb[0].mxu0
      %v1279 = vpop.f32.mrb[0].mxu0
      %v1280 = vadd.f32 %v1137, %v1279
      %v1281 = vpop.f32.mrb[0].mxu0
      %1282 = vdwg.mxu0
      %vm1283 = vcmp.ge.f32.partialorder %v1221, 0.0
      %vm1284 = vcmp.ge.f32.partialorder %v1224, 0.0
      %vm1285 = vcmp.ge.f32.partialorder %v1229, 0.0
      %vm1286 = vcmp.ge.f32.partialorder %v1232, 0.0
      %vm1287 = vcmp.ge.f32.partialorder %v1237, 0.0
      %vm1288 = vcmp.ge.f32.partialorder %v1240, 0.0
      %vm1289 = vcmp.ge.f32.partialorder %v1245, 0.0
      %vm1290 = vcmp.ge.f32.partialorder %v1248, 0.0
      %vm1291 = vcmp.ge.f32.partialorder %v1253, 0.0
      %vm1292 = vcmp.ge.f32.partialorder %v1256, 0.0
      %vm1293 = vcmp.ge.f32.partialorder %v1261, 0.0
      %vm1294 = vcmp.ge.f32.partialorder %v1264, 0.0
      %vm1295 = vcmp.ge.f32.partialorder %v1269, 0.0
      %vm1296 = vcmp.ge.f32.partialorder %v1272, 0.0
      %vm1297 = vcmp.ge.f32.partialorder %v1277, 0.0
      %vm1298 = vcmp.ge.f32.partialorder %v1280, 0.0
      %v1299 = vmul.f32 %v1221, 0.1
      %v1300 = vmul.f32 %v1224, 0.1
      %v1301 = vmul.f32 %v1229, 0.1
      %v1302 = vmul.f32 %v1232, 0.1
      %v1303 = vmul.f32 %v1237, 0.1
      %v1304 = vmul.f32 %v1240, 0.1
      %v1305 = vmul.f32 %v1245, 0.1
      %v1306 = vmul.f32 %v1248, 0.1
      %v1307 = vmul.f32 %v1253, 0.1
      %v1308 = vmul.f32 %v1256, 0.1
      %v1309 = vmul.f32 %v1261, 0.1
      %v1310 = vmul.f32 %v1264, 0.1
      %v1311 = vmul.f32 %v1269, 0.1
      %v1312 = vmul.f32 %v1272, 0.1
      %v1313 = vmul.f32 %v1277, 0.1
      %v1314 = vmul.f32 %v1280, 0.1
      %v1315 = vsel %vm1283, %v1221, %v1299
      %v1316 = vsel %vm1284, %v1224, %v1300
      %v1317 = vsel %vm1285, %v1229, %v1301
      %v1318 = vsel %vm1286, %v1232, %v1302
      %v1319 = vsel %vm1287, %v1237, %v1303
      %v1320 = vsel %vm1288, %v1240, %v1304
      %v1321 = vsel %vm1289, %v1245, %v1305
      %v1322 = vsel %vm1290, %v1248, %v1306
      %v1323 = vsel %vm1291, %v1253, %v1307
      %v1324 = vsel %vm1292, %v1256, %v1308
      %v1325 = vsel %vm1293, %v1261, %v1309
      %v1326 = vsel %vm1294, %v1264, %v1310
      %v1327 = vsel %vm1295, %v1269, %v1311
      %v1328 = vsel %vm1296, %v1272, %v1312
      %v1329 = vsel %vm1297, %v1277, %v1313
      %v1330 = vsel %vm1298, %v1280, %v1314
      %v1331 = vpack.c.bf16 %v1316, %v1315
      %v1332 = vpack.c.bf16 %v1318, %v1317
      %v1333 = vpack.c.bf16 %v1320, %v1319
      %v1334 = vpack.c.bf16 %v1322, %v1321
      %v1335 = vpack.c.bf16 %v1324, %v1323
      %v1336 = vpack.c.bf16 %v1326, %v1325
      %v1337 = vpack.c.bf16 %v1328, %v1327
      %v1338 = vpack.c.bf16 %v1330, %v1329
      %v1339 = vld [vmem:[#allocation8 + $0x100] sm:$0x4]
      %v1340 = vunpack.c.l.bf16 %v1339
      %1342 = vset.pattern.permute.xlu0 0
      %1343 = vperm.xlu0 %1342, %v1340
      %v1344 = vpop.permute.xlu0 %1343
      %v1346 = vunpack.c.l.b16 %v1339
      %v1347 = vpack.c.b16 %v1346, %v1346
      %v1349 = vshrl.u32 %v1347, 16
      %v1351 = vrot.slane %v1349, 2
      %v1353 = vrot.slane %v1344, 4
      %1355 = vmatprep.subr.bf16.mxu0 0
      %1356 = vmatpush1.bf16.xpose.msra.mxu0 %v1331
      %1357 = vmatprep.subr.bf16.mxu0 0
      %1358 = vmatpush1.bf16.xpose.msra.mxu0 %v1332
      %1359 = vmatprep.subr.bf16.mxu0 0
      %1360 = vmatpush1.bf16.xpose.msra.mxu0 %v1333
      %1361 = vmatprep.subr.bf16.mxu0 0
      %1362 = vmatpush1.bf16.xpose.msra.mxu0 %v1334
      %1363 = vmatprep.subr.bf16.mxu0 0
      %1364 = vmatpush1.bf16.xpose.msra.mxu0 %v1335
      %1365 = vmatprep.subr.bf16.mxu0 0
      %1366 = vmatpush1.bf16.xpose.msra.mxu0 %v1336
      %1367 = vmatprep.subr.bf16.mxu0 0
      %1368 = vmatpush1.bf16.xpose.msra.mxu0 %v1337
      %1369 = vmatprep.subr.bf16.mxu0 0
      %1370 = vmatpush1.bf16.xpose.msra.mxu0 %v1338
      %1371 = vmatprep.subr.bf16.mxu0 0
      %1372 = vmatpush1.bf16.xpose.msra.mxu0 0
      %1373 = vmatprep.subr.bf16.mxu0 0
      %1374 = vmatpush1.bf16.xpose.msra.mxu0 0
      %1375 = vmatprep.subr.bf16.mxu0 0
      %1376 = vmatpush1.bf16.xpose.msra.mxu0 0
      %1377 = vmatprep.subr.bf16.mxu0 0
      %1378 = vmatpush1.bf16.xpose.msra.mxu0 0
      %1379 = vmatprep.subr.bf16.mxu0 0
      %1380 = vmatpush1.bf16.xpose.msra.mxu0 0
      %1381 = vmatprep.subr.bf16.mxu0 0
      %1382 = vmatpush1.bf16.xpose.msra.mxu0 0
      %1383 = vmatprep.subr.bf16.mxu0 0
      %1384 = vmatpush1.bf16.xpose.msra.mxu0 0
      %1385 = vmatprep.subr.bf16.mxu0 0
      %1386 = vmatpush1.bf16.xpose.msra.mxu0 0
      %1387 = vmatprep.mubr.bf16.mxu0 0
      %1388 = vmatmul.mubr.bf16.gmra.mrb[0].mxu0 %v1351
      %v1389 = vpop.f32.mrb[0].mxu0
      %v1390 = vadd.f32 %v1353, %v1389
      %v1391 = vpop.f32.mrb[0].mxu0
      %v1392 = vpop.f32.mrb[0].mxu0
      %v1393 = vpop.f32.mrb[0].mxu0
      %1394 = vdwg.mxu0
      %1395 = vst [vmem:[#allocation9] sm:$0x1] %v1390
    $region37: #{tpu_custom_call.1} parent=1 // pred_fallthru
      _
    // Predicated region
    $region38: #{tpu_custom_call.1} parent=1 // pred_check
      _
    $region39: #{tpu_custom_call.1} parent=1 // pred_check_branch
      %1397 = sbr.rel (0) target = $region41
    $region40: #{tpu_custom_call.1} parent=1 // pred_region
      %s1399 = ssub.s32 16, 16
      %1400 = vsyncadd [#allocation5], %s1399
      %s1402 = sshll.u32 [#allocation9], 4
      %s1403 = int_to_ptr.vmem [resolvable:$true] %s1402
      %1405 = dma.vmem_to_hbm [thread:$0]  %s1403, 16, %s4, [#allocation5]
    $region41: #{tpu_custom_call.1} parent=1 // pred_fallthru
      _
    // Predicated region
    $region42: #{tpu_custom_call.1} parent=1 // pred_check
      _
    $region43: #{tpu_custom_call.1} parent=1 // pred_check_branch
      %1407 = sbr.rel (0) target = $region45
    $region44: #{tpu_custom_call.1} parent=1 // pred_region
      %1408 = dma.done [#allocation5], 16
    $region45: #{tpu_custom_call.1} parent=1 // pred_fallthru
      _
    %1409 = vsyncpa [#allocation4], 1
    %1410 = vsyncpa [#allocation7], 1
    %1411 = vsyncpa [#allocation5], 1

</llo_original>
